<compile_context>
chip_gen: v6e
topology: v6e:2x2x1
jax: 0.10.0
libtpu: 0.0.40
codegen_flags: <defaults>
</compile_context>

<pallas_src>
import functools
import math

import jax
import jax.numpy as jnp
from jax import lax
from jax.experimental import pallas as pl
from jax.experimental.pallas import tpu as pltpu

BN_EPS = 1e-5
LANE = 128
NEG_INF = -1e30


# --------------------------------------------------------------------------- kernels
def _gin_conv_kernel(apply_input_bn,
                     a_ref, xs_ref, xi_ref, mask_ref, scale_ref, shift_ref,
                     wa_ref, ba_ref, wb_ref, bb_ref,
                     h_ref, stats_ref, acc_ref):
    """One GIN layer up to (not including) its BatchNorm.

    grid = (row tiles i ["parallel"], source tiles k ["arbitrary" reduction]).
    Outputs: pre-BN activations h (bf16) and masked per-row-tile sums of h and h^2
    (fp32) for the BatchNorm statistics.  If apply_input_bn, the *previous* layer's
    folded BatchNorm (scale/shift) + ReLU is applied to the input features on the fly.
    """
    k = pl.program_id(1)
    nk = pl.num_programs(1)

    @pl.when(k == 0)
    def _init():
        acc_ref[...] = jnp.zeros_like(acc_ref)

    xs = xs_ref[...]
    if apply_input_bn:
        xs = jnp.maximum(xs.astype(jnp.float32) * scale_ref[...] + shift_ref[...], 0.0)
        xs = xs.astype(jnp.bfloat16)
    # Neighbor aggregation (A @ x) on the MXU: bf16 inputs, fp32 accumulation.
    acc_ref[...] += jnp.dot(a_ref[...], xs, preferred_element_type=jnp.float32)

    @pl.when(k == nk - 1)
    def _finalize():
        xi = xi_ref[...].astype(jnp.float32)
        if apply_input_bn:
            xi = jnp.maximum(xi * scale_ref[...] + shift_ref[...], 0.0)
        # GINConv with eps == 0: no (1 + eps) multiply.
        z = (xi + acc_ref[...]).astype(jnp.bfloat16)
        h = jnp.dot(z, wa_ref[...], preferred_element_type=jnp.float32) + ba_ref[...]
        h = jnp.maximum(h, 0.0).astype(jnp.bfloat16)
        h = jnp.dot(h, wb_ref[...], preferred_element_type=jnp.float32) + bb_ref[...]

        m = mask_ref[...]                              # (tm, 1): 1.0 real node, 0.0 padding
        hm = h * m
        s1 = jnp.sum(hm, axis=0, keepdims=True)        # masked sum(h)
        s2 = jnp.sum(hm * h, axis=0, keepdims=True)    # masked sum(h^2)  (one-pass variance)
        stats_ref[...] = jnp.concatenate([s1, s2], axis=0).reshape(stats_ref.shape)
        h_ref[...] = h.astype(h_ref.dtype)


def _pool_head_kernel(num_classes,
                      p_ref, h_ref, scale_ref, shift_ref, wl_ref, bl_ref,
                      out_ref, acc_ref):
    """relu(BN2(h2)) -> global_add_pool -> Linear -> log_softmax.

    grid = (node tiles k ["arbitrary" reduction]); pooled sums accumulate in VMEM.
    """
    k = pl.program_id(0)

    @pl.when(k == 0)
    def _init():
        acc_ref[...] = jnp.zeros_like(acc_ref)

    a = jnp.maximum(h_ref[...].astype(jnp.float32) * scale_ref[...] + shift_ref[...], 0.0)
    acc_ref[...] += jnp.dot(p_ref[...], a.astype(jnp.bfloat16),
                            preferred_element_type=jnp.float32)

    @pl.when(k == pl.num_programs(0) - 1)
    def _finalize():
        logits = jnp.dot(acc_ref[...].astype(jnp.bfloat16), wl_ref[...],
                         preferred_element_type=jnp.float32) + bl_ref[...]
        # Mask out lane-padded (non-existent) classes before the softmax.
        col = lax.broadcasted_iota(jnp.int32, logits.shape, 1)
        logits = jnp.where(col < num_classes, logits, NEG_INF)
        mx = jnp.max(logits, axis=1, keepdims=True)
        z = logits - mx
        lse = jnp.log(jnp.sum(jnp.exp(z), axis=1, keepdims=True))
        out_ref[...] = (z - lse).astype(out_ref.dtype)


# --------------------------------------------------------------------------- pallas_call wrappers
def _gin_conv_layer(adj, x, mask, scale_in, shift_in, wa, ba, wb, bb,
                    apply_input_bn, *, tm, tk, vmem_limit_bytes):
    n_pad, c_in = x.shape
    h_dim = wa.shape[1]
    ni, nk = n_pad // tm, n_pad // tk
    kernel = functools.partial(_gin_conv_kernel, apply_input_bn)
    return pl.pallas_call(
        kernel,
        out_shape=(jax.ShapeDtypeStruct((n_pad, h_dim), jnp.bfloat16),
                   jax.ShapeDtypeStruct((ni, 2, h_dim), jnp.float32)),
        grid=(ni, nk),
        in_specs=[
            pl.BlockSpec((tm, tk), lambda i, k: (i, k)),      # A[row tile, source tile]
            pl.BlockSpec((tk, c_in), lambda i, k: (k, 0)),    # x (source rows)
            pl.BlockSpec((tm, c_in), lambda i, k: (i, 0)),    # x (self rows)
            pl.BlockSpec((tm, 1), lambda i, k: (i, 0)),       # valid-node mask
            pl.BlockSpec((1, c_in), lambda i, k: (0, 0)),     # folded BN scale (prev layer)
            pl.BlockSpec((1, c_in), lambda i, k: (0, 0)),     # folded BN shift (prev layer)
            pl.BlockSpec((c_in, h_dim), lambda i, k: (0, 0)),
            pl.BlockSpec((1, h_dim), lambda i, k: (0, 0)),
            pl.BlockSpec((h_dim, h_dim), lambda i, k: (0, 0)),
            pl.BlockSpec((1, h_dim), lambda i, k: (0, 0)),
        ],
        out_specs=(
            pl.BlockSpec((tm, h_dim), lambda i, k: (i, 0)),
            pl.BlockSpec((1, 2, h_dim), lambda i, k: (i, 0, 0)),
        ),
        scratch_shapes=[pltpu.VMEM((tm, c_in), jnp.float32)],
        compiler_params=pltpu.CompilerParams(
            dimension_semantics=("parallel", "arbitrary"),
            vmem_limit_bytes=vmem_limit_bytes),
    )(adj, x, x, mask, scale_in, shift_in, wa, ba, wb, bb)


def _pool_head(pool, h2, scale2, shift2, wl, bl, num_classes, *, tk, vmem_limit_bytes):
    g_pad, n_pad = pool.shape
    hid_p = h2.shape[1]
    out_p = wl.shape[1]
    nk = n_pad // tk
    kernel = functools.partial(_pool_head_kernel, num_classes)
    return pl.pallas_call(
        kernel,
        out_shape=jax.ShapeDtypeStruct((g_pad, out_p), jnp.float32),
        grid=(nk,),
        in_specs=[
            pl.BlockSpec((g_pad, tk), lambda k: (0, k)),   # pooling matrix tile
            pl.BlockSpec((tk, hid_p), lambda k: (k, 0)),   # h2 (pre-BN) node tile
            pl.BlockSpec((1, hid_p), lambda k: (0, 0)),    # folded BN2 scale
            pl.BlockSpec((1, hid_p), lambda k: (0, 0)),    # folded BN2 shift
            pl.BlockSpec((hid_p, out_p), lambda k: (0, 0)),
            pl.BlockSpec((1, out_p), lambda k: (0, 0)),
        ],
        out_specs=pl.BlockSpec((g_pad, out_p), lambda k: (0, 0)),
        scratch_shapes=[pltpu.VMEM((g_pad, hid_p), jnp.float32)],
        compiler_params=pltpu.CompilerParams(
            dimension_semantics=("arbitrary",),
            vmem_limit_bytes=vmem_limit_bytes),
    )(pool, h2, scale2, shift2, wl, bl)


# --------------------------------------------------------------------------- glue
def _round_up(a, b):
    return ((a + b - 1) // b) * b


def _pad2(a, rows, cols):
    return jnp.pad(a, ((0, rows - a.shape[0]), (0, cols - a.shape[1])))


def _finalize_bn(stats, gamma, beta, n_real):
    """Reduce per-tile masked sums -> folded training-mode BatchNorm scale/shift."""
    s = jnp.sum(stats, axis=0)                                 # (2, H)
    mean = s[0] / n_real
    var = jnp.maximum(s[1] / n_real - mean * mean, 0.0)        # biased variance, one pass
    inv_std = lax.rsqrt(var + BN_EPS)
    scale = gamma[0] * inv_std
    shift = beta[0] - mean * scale
    return scale[None, :], shift[None, :]


def gin_forward(x, edge_index, batch, params, num_graphs, *,
                tm=128, tk=128, vmem_limit_bytes=48 * 1024 * 1024):
    """Pad operands to TPU-friendly shapes, build dense bf16 A / pool matrices, run kernels."""
    # TODO(synk): for very large / sparse graphs, replace the dense A @ x with an edge-list
    # segment-sum (scalar-prefetch gather) to remove the O(N^2) adjacency term entirely.
    n_nodes, in_ch = x.shape
    hid = params["w1b"].shape[1]
    out_ch = params["wl"].shape[1]

    n_pad = _round_up(n_nodes, math.lcm(tm, tk))
    cin_p = _round_up(in_ch, LANE)
    hid_p = _round_up(hid, LANE)
    out_p = _round_up(out_ch, LANE)
    g_pad = _round_up(num_graphs, 8)

    # Dense adjacency: agg[i] = sum over edges (j -> i) of x[j].
    # bf16 is exact for integer edge multiplicities up to 256.
    src, dst = edge_index[0], edge_index[1]
    adj = jnp.zeros((n_pad, n_pad), jnp.float32).at[dst, src].add(1.0).astype(jnp.bfloat16)

    # Pooling matrix; padded nodes get batch id -1 -> contribute to no graph.
    batch_p = jnp.full((n_pad,), -1, jnp.int32).at[:n_nodes].set(batch.astype(jnp.int32))
    pool = (jnp.arange(g_pad, dtype=jnp.int32)[:, None] == batch_p[None, :]).astype(jnp.bfloat16)

    x_p = _pad2(x, n_pad, cin_p).astype(jnp.bfloat16)
    mask = (jnp.arange(n_pad) < n_nodes).astype(jnp.float32)[:, None]

    w1a = _pad2(params["w1a"], cin_p, hid_p).astype(jnp.bfloat16)
    b1a = _pad2(params["b1a"], 1, hid_p)
    w1b = _pad2(params["w1b"], hid_p, hid_p).astype(jnp.bfloat16)
    b1b = _pad2(params["b1b"], 1, hid_p)
    g1 = _pad2(params["g1"], 1, hid_p)
    be1 = _pad2(params["be1"], 1, hid_p)
    w2a = _pad2(params["w2a"], hid_p, hid_p).astype(jnp.bfloat16)
    b2a = _pad2(params["b2a"], 1, hid_p)
    w2b = _pad2(params["w2b"], hid_p, hid_p).astype(jnp.bfloat16)
    b2b = _pad2(params["b2b"], 1, hid_p)
    g2 = _pad2(params["g2"], 1, hid_p)
    be2 = _pad2(params["be2"], 1, hid_p)
    wl = _pad2(params["wl"], hid_p, out_p).astype(jnp.bfloat16)
    bl = _pad2(params["bl"], 1, out_p)

    one = jnp.ones((1, cin_p), jnp.float32)
    zero = jnp.zeros((1, cin_p), jnp.float32)

    # conv1 pre-BN + masked BN1 partial sums.
    h1, stats1 = _gin_conv_layer(adj, x_p, mask, one, zero, w1a, b1a, w1b, b1b,
                                 False, tm=tm, tk=tk, vmem_limit_bytes=vmem_limit_bytes)
    scale1, shift1 = _finalize_bn(stats1, g1, be1, n_nodes)

    # conv2 consumes relu(BN1(h1)) on the fly (folded scale/shift), produces pre-BN h2.
    h2, stats2 = _gin_conv_layer(adj, h1, mask, scale1, shift1, w2a, b2a, w2b, b2b,
                                 True, tm=tm, tk=tk, vmem_limit_bytes=vmem_limit_bytes)
    scale2, shift2 = _finalize_bn(stats2, g2, be2, n_nodes)

    # relu(BN2(h2)) -> global_add_pool -> Linear -> log_softmax.
    out_pad = _pool_head(pool, h2, scale2, shift2, wl, bl, out_ch,
                         tk=tk, vmem_limit_bytes=vmem_limit_bytes)
    return out_pad[:num_graphs, :out_ch]


def init_params(key, in_channels, hidden_channels, out_channels):
    ks = jax.random.split(key, 5)

    def lin(k, fan_in, fan_out):
        bound = 1.0 / math.sqrt(fan_in)
        kw, kb = jax.random.split(k)
        w = jax.random.uniform(kw, (fan_in, fan_out), jnp.float32, -bound, bound)
        b = jax.random.uniform(kb, (1, fan_out), jnp.float32, -bound, bound)
        return w, b

    w1a, b1a = lin(ks[0], in_channels, hidden_channels)
    w1b, b1b = lin(ks[1], hidden_channels, hidden_channels)
    w2a, b2a = lin(ks[2], hidden_channels, hidden_channels)
    w2b, b2b = lin(ks[3], hidden_channels, hidden_channels)
    wl, bl = lin(ks[4], hidden_channels, out_channels)
    ones = jnp.ones((1, hidden_channels), jnp.float32)
    zeros = jnp.zeros((1, hidden_channels), jnp.float32)
    return dict(
        w1a=w1a, b1a=b1a, w1b=w1b, b1b=b1b, g1=ones, be1=zeros,
        w2a=w2a, b2a=b2a, w2b=w2b, b2b=b2b, g2=ones, be2=zeros,
        wl=wl, bl=bl,
    )


if __name__ == "__main__":
    key = jax.random.PRNGKey(0)
    in_channels, hidden_channels, out_channels = 8, 32, 8
    num_graphs, nodes_per_graph, edges_per_graph = 4, 50, 120
    n_nodes = num_graphs * nodes_per_graph

    k_x, k_e, k_p = jax.random.split(key, 3)
    x = jax.random.normal(k_x, (n_nodes, in_channels), jnp.float32)
    batch = jnp.repeat(jnp.arange(num_graphs, dtype=jnp.int32), nodes_per_graph)

    ekeys = jax.random.split(k_e, num_graphs)
    edges = []
    for g in range(num_graphs):
        lo = g * nodes_per_graph
        edges.append(jax.random.randint(ekeys[g], (2, edges_per_graph),
                                        lo, lo + nodes_per_graph))
    edge_index = jnp.concatenate(edges, axis=1)

    params = init_params(k_p, in_channels, hidden_channels, out_channels)

    # tm=64, tk=128 -> padded N=256, conv grid (4, 2), pool grid (2,): exercises the
    # parallel row axis, the k-reduction accumulator and the padded-row masking.
    out = gin_forward(x, edge_index, batch, params, num_graphs, tm=64, tk=128)
    jax.block_until_ready(out)

    assert out.shape == (num_graphs, out_channels)
    assert bool(jnp.all(jnp.isfinite(out)))
    prob_sum = jnp.sum(jnp.exp(out), axis=1)          # log_softmax rows -> probs sum to 1
    assert bool(jnp.all(jnp.abs(prob_sum - 1.0) < 1e-3))
    print("KERNEL_OK")
</pallas_src>

<mosaic_0001>
module attributes {stable_mosaic.version = 11 : i64} {
  func.func @_gin_conv_kernel(%arg0: i32, %arg1: i32, %arg2: memref<64x128xbf16, #tpu.memory_space<vmem>>, %arg3: memref<128x128xbf16, #tpu.memory_space<vmem>>, %arg4: memref<64x128xbf16, #tpu.memory_space<vmem>>, %arg5: memref<64x1xf32, #tpu.memory_space<vmem>>, %arg6: memref<1x128xf32, #tpu.memory_space<vmem>>, %arg7: memref<1x128xf32, #tpu.memory_space<vmem>>, %arg8: memref<128x128xbf16, #tpu.memory_space<vmem>>, %arg9: memref<1x128xf32, #tpu.memory_space<vmem>>, %arg10: memref<128x128xbf16, #tpu.memory_space<vmem>>, %arg11: memref<1x128xf32, #tpu.memory_space<vmem>>, %arg12: memref<64x128xbf16, #tpu.memory_space<vmem>>, %arg13: memref<1x2x128xf32, #tpu.memory_space<vmem>>, %arg14: memref<64x128xf32, #tpu.memory_space<vmem>>) attributes {dimension_semantics = [#tpu.dimension_semantics<parallel>, #tpu.dimension_semantics<arbitrary>], iteration_bounds = array<i64: 4, 2>, scalar_prefetch = 0 : i64, scratch_operands = 1 : i64, tpu.core_type = #tpu.core_type<tc>, window_params = [{transform_indices = @transform_0, window_bounds = array<i64: 64, 128>}, {transform_indices = @transform_1, window_bounds = array<i64: 128, 128>}, {transform_indices = @transform_2, window_bounds = array<i64: 64, 128>}, {transform_indices = @transform_3, window_bounds = array<i64: 64, 1>}, {pipeline_mode = #tpu.pipeline_mode<synchronous>, transform_indices = @transform_4, window_bounds = array<i64: 1, 128>}, {pipeline_mode = #tpu.pipeline_mode<synchronous>, transform_indices = @transform_5, window_bounds = array<i64: 1, 128>}, {pipeline_mode = #tpu.pipeline_mode<synchronous>, transform_indices = @transform_6, window_bounds = array<i64: 128, 128>}, {pipeline_mode = #tpu.pipeline_mode<synchronous>, transform_indices = @transform_7, window_bounds = array<i64: 1, 128>}, {pipeline_mode = #tpu.pipeline_mode<synchronous>, transform_indices = @transform_8, window_bounds = array<i64: 128, 128>}, {pipeline_mode = #tpu.pipeline_mode<synchronous>, transform_indices = @transform_9, window_bounds = array<i64: 1, 128>}, {transform_indices = @transform_10, window_bounds = array<i64: 64, 128>}, {transform_indices = @transform_11, window_bounds = array<i64: 1, 2, 128>}]} {
    %c0_i32 = arith.constant 0 : i32
    %0 = arith.cmpi eq, %arg1, %c0_i32 : i32
    %1 = arith.extui %0 : i1 to i32
    %c0_i32_0 = arith.constant 0 : i32
    %2 = arith.cmpi ne, %1, %c0_i32_0 : i32
    scf.if %2 {
      %cst_9 = arith.constant 0.000000e+00 : f32
      %12 = vector.broadcast %cst_9 : f32 to vector<64x128xf32>
      %c0_10 = arith.constant 0 : index
      %c0_11 = arith.constant 0 : index
      %13 = vector.load %arg14[%c0_10, %c0_11] : memref<64x128xf32, #tpu.memory_space<vmem>>, vector<64x128xf32>
      tpu.vector_store %arg14[%c0_10, %c0_11], %12 {strides = array<i32>} : memref<64x128xf32, #tpu.memory_space<vmem>>, vector<64x128xf32>,
    } else {
    }
    %c0 = arith.constant 0 : index
    %c0_1 = arith.constant 0 : index
    %3 = vector.load %arg3[%c0, %c0_1] : memref<128x128xbf16, #tpu.memory_space<vmem>>, vector<128x128xbf16>
    %c0_2 = arith.constant 0 : index
    %c0_3 = arith.constant 0 : index
    %4 = vector.load %arg14[%c0_2, %c0_3] : memref<64x128xf32, #tpu.memory_space<vmem>>, vector<64x128xf32>
    %c0_4 = arith.constant 0 : index
    %c0_5 = arith.constant 0 : index
    %5 = vector.load %arg2[%c0_4, %c0_5] : memref<64x128xbf16, #tpu.memory_space<vmem>>, vector<64x128xbf16>
    %cst = arith.constant dense<0.000000e+00> : vector<64x128xf32>
    %6 = tpu.matmul %5, %3, %cst {dimension_numbers = #tpu.dot_dimension_numbers<[1], [0], [0], [1], [0, 0, 1, 1], [], []>} : vector<64x128xbf16>, vector<128x128xbf16>, vector<64x128xf32> -> vector<64x128xf32>
    %7 = arith.addf %4, %6 : vector<64x128xf32>
    %c0_6 = arith.constant 0 : index
    %c0_7 = arith.constant 0 : index
    %8 = vector.load %arg14[%c0_6, %c0_7] : memref<64x128xf32, #tpu.memory_space<vmem>>, vector<64x128xf32>
    tpu.vector_store %arg14[%c0_6, %c0_7], %7 {strides = array<i32>} : memref<64x128xf32, #tpu.memory_space<vmem>>, vector<64x128xf32>,
    %c1_i32 = arith.constant 1 : i32
    %9 = arith.cmpi eq, %arg1, %c1_i32 : i32
    %10 = arith.extui %9 : i1 to i32
    %c0_i32_8 = arith.constant 0 : i32
    %11 = arith.cmpi ne, %10, %c0_i32_8 : i32
    scf.if %11 {
      %c0_9 = arith.constant 0 : index
      %c0_10 = arith.constant 0 : index
      %12 = vector.load %arg4[%c0_9, %c0_10] : memref<64x128xbf16, #tpu.memory_space<vmem>>, vector<64x128xbf16>
      %13 = arith.extf %12 : vector<64x128xbf16> to vector<64x128xf32>
      %c0_11 = arith.constant 0 : index
      %c0_12 = arith.constant 0 : index
      %14 = vector.load %arg14[%c0_11, %c0_12] : memref<64x128xf32, #tpu.memory_space<vmem>>, vector<64x128xf32>
      %15 = arith.addf %13, %14 : vector<64x128xf32>
      %16 = arith.truncf %15 : vector<64x128xf32> to vector<64x128xbf16>
      %c0_13 = arith.constant 0 : index
      %c0_14 = arith.constant 0 : index
      %17 = vector.load %arg8[%c0_13, %c0_14] : memref<128x128xbf16, #tpu.memory_space<vmem>>, vector<128x128xbf16>
      %cst_15 = arith.constant dense<0.000000e+00> : vector<64x128xf32>
      %18 = tpu.matmul %16, %17, %cst_15 {dimension_numbers = #tpu.dot_dimension_numbers<[1], [0], [0], [1], [0, 0, 1, 1], [], []>} : vector<64x128xbf16>, vector<128x128xbf16>, vector<64x128xf32> -> vector<64x128xf32>
      %c0_16 = arith.constant 0 : index
      %c0_17 = arith.constant 0 : index
      %19 = vector.load %arg9[%c0_16, %c0_17] : memref<1x128xf32, #tpu.memory_space<vmem>>, vector<1x128xf32>
      %20 = vector.broadcast %19 : vector<1x128xf32> to vector<64x128xf32>
      %21 = arith.addf %18, %20 : vector<64x128xf32>
      %cst_18 = arith.constant 0.000000e+00 : f32
      %22 = vector.broadcast %cst_18 : f32 to vector<64x128xf32>
      %23 = arith.maximumf %21, %22 : vector<64x128xf32>
      %24 = arith.truncf %23 : vector<64x128xf32> to vector<64x128xbf16>
      %c0_19 = arith.constant 0 : index
      %c0_20 = arith.constant 0 : index
      %25 = vector.load %arg10[%c0_19, %c0_20] : memref<128x128xbf16, #tpu.memory_space<vmem>>, vector<128x128xbf16>
      %cst_21 = arith.constant dense<0.000000e+00> : vector<64x128xf32>
      %26 = tpu.matmul %24, %25, %cst_21 {dimension_numbers = #tpu.dot_dimension_numbers<[1], [0], [0], [1], [0, 0, 1, 1], [], []>} : vector<64x128xbf16>, vector<128x128xbf16>, vector<64x128xf32> -> vector<64x128xf32>
      %c0_22 = arith.constant 0 : index
      %c0_23 = arith.constant 0 : index
      %27 = vector.load %arg11[%c0_22, %c0_23] : memref<1x128xf32, #tpu.memory_space<vmem>>, vector<1x128xf32>
      %28 = vector.broadcast %27 : vector<1x128xf32> to vector<64x128xf32>
      %29 = arith.addf %26, %28 : vector<64x128xf32>
      %c0_24 = arith.constant 0 : index
      %c0_25 = arith.constant 0 : index
      %30 = vector.load %arg5[%c0_24, %c0_25] : memref<64x1xf32, #tpu.memory_space<vmem>>, vector<64x1xf32>
      %31 = vector.broadcast %30 : vector<64x1xf32> to vector<64x128xf32>
      %32 = arith.mulf %29, %31 : vector<64x128xf32>
      %cst_26 = arith.constant dense<0.000000e+00> : vector<128xf32>
      %33 = vector.multi_reduction <add>, %32, %cst_26 [0] : vector<64x128xf32> to vector<128xf32>
      %34 = vector.shape_cast %33 : vector<128xf32> to vector<1x128xf32>
      %35 = arith.mulf %32, %29 : vector<64x128xf32>
      %cst_27 = arith.constant dense<0.000000e+00> : vector<128xf32>
      %36 = vector.multi_reduction <add>, %35, %cst_27 [0] : vector<64x128xf32> to vector<128xf32>
      %37 = vector.shape_cast %36 : vector<128xf32> to vector<1x128xf32>
      %38 = tpu.concatenate %34, %37 in 0 : vector<1x128xf32>, vector<1x128xf32> -> vector<2x128xf32>
      %39 = vector.shape_cast %38 : vector<2x128xf32> to vector<1x2x128xf32>
      %c0_28 = arith.constant 0 : index
      %c0_29 = arith.constant 0 : index
      %c0_30 = arith.constant 0 : index
      %40 = vector.load %arg13[%c0_28, %c0_29, %c0_30] : memref<1x2x128xf32, #tpu.memory_space<vmem>>, vector<1x2x128xf32>
      tpu.vector_store %arg13[%c0_28, %c0_29, %c0_30], %39 {strides = array<i32>} : memref<1x2x128xf32, #tpu.memory_space<vmem>>, vector<1x2x128xf32>,
      %41 = arith.truncf %29 : vector<64x128xf32> to vector<64x128xbf16>
      %c0_31 = arith.constant 0 : index
      %c0_32 = arith.constant 0 : index
      %42 = vector.load %arg12[%c0_31, %c0_32] : memref<64x128xbf16, #tpu.memory_space<vmem>>, vector<64x128xbf16>
      tpu.vector_store %arg12[%c0_31, %c0_32], %41 {strides = array<i32>} : memref<64x128xbf16, #tpu.memory_space<vmem>>, vector<64x128xbf16>,
    } else {
    }
    return
  }
  func.func @transform_0(%arg0: i32, %arg1: i32) -> (i32, i32) {
    %c0_i32 = arith.constant 0 : i32
    return %arg0, %arg1 : i32, i32
  }
  func.func @transform_1(%arg0: i32, %arg1: i32) -> (i32, i32) {
    %c0_i32 = arith.constant 0 : i32
    %c0_i32_0 = arith.constant 0 : i32
    return %arg1, %c0_i32 : i32, i32
  }
  func.func @transform_2(%arg0: i32, %arg1: i32) -> (i32, i32) {
    %c0_i32 = arith.constant 0 : i32
    %c0_i32_0 = arith.constant 0 : i32
    return %arg0, %c0_i32 : i32, i32
  }
  func.func @transform_3(%arg0: i32, %arg1: i32) -> (i32, i32) {
    %c0_i32 = arith.constant 0 : i32
    %c0_i32_0 = arith.constant 0 : i32
    return %arg0, %c0_i32 : i32, i32
  }
  func.func @transform_4(%arg0: i32, %arg1: i32) -> (i32, i32) {
    %c0_i32 = arith.constant 0 : i32
    %c0_i32_0 = arith.constant 0 : i32
    %c0_i32_1 = arith.constant 0 : i32
    return %c0_i32, %c0_i32_0 : i32, i32
  }
  func.func @transform_5(%arg0: i32, %arg1: i32) -> (i32, i32) {
    %c0_i32 = arith.constant 0 : i32
    %c0_i32_0 = arith.constant 0 : i32
    %c0_i32_1 = arith.constant 0 : i32
    return %c0_i32, %c0_i32_0 : i32, i32
  }
  func.func @transform_6(%arg0: i32, %arg1: i32) -> (i32, i32) {
    %c0_i32 = arith.constant 0 : i32
    %c0_i32_0 = arith.constant 0 : i32
    %c0_i32_1 = arith.constant 0 : i32
    return %c0_i32, %c0_i32_0 : i32, i32
  }
  func.func @transform_7(%arg0: i32, %arg1: i32) -> (i32, i32) {
    %c0_i32 = arith.constant 0 : i32
    %c0_i32_0 = arith.constant 0 : i32
    %c0_i32_1 = arith.constant 0 : i32
    return %c0_i32, %c0_i32_0 : i32, i32
  }
  func.func @transform_8(%arg0: i32, %arg1: i32) -> (i32, i32) {
    %c0_i32 = arith.constant 0 : i32
    %c0_i32_0 = arith.constant 0 : i32
    %c0_i32_1 = arith.constant 0 : i32
    return %c0_i32, %c0_i32_0 : i32, i32
  }
  func.func @transform_9(%arg0: i32, %arg1: i32) -> (i32, i32) {
    %c0_i32 = arith.constant 0 : i32
    %c0_i32_0 = arith.constant 0 : i32
    %c0_i32_1 = arith.constant 0 : i32
    return %c0_i32, %c0_i32_0 : i32, i32
  }
  func.func @transform_10(%arg0: i32, %arg1: i32) -> (i32, i32) {
    %c0_i32 = arith.constant 0 : i32
    %c0_i32_0 = arith.constant 0 : i32
    return %arg0, %c0_i32 : i32, i32
  }
  func.func @transform_11(%arg0: i32, %arg1: i32) -> (i32, i32, i32) {
    %c0_i32 = arith.constant 0 : i32
    %c0_i32_0 = arith.constant 0 : i32
    %c0_i32_1 = arith.constant 0 : i32
    return %arg0, %c0_i32, %c0_i32_0 : i32, i32, i32
  }
}

</mosaic_0001>

<llo_original>
// kernel: tpu_custom_call.1
$region0: #{tpu_custom_call.1}
  #allocation0 [shape = 'u32[]', space=smem, size = 0x4, offset = 0x4, fixed_abs, tag = 'smem constant byte address 0x4 - core index']
  #allocation1 [shape = 'u32[144,128]{1,0:T(1,128)}', space=vmem, size = 0x12000, scoped, tag = 'internal scratch']
  #allocation2 [shape = 'f32[64,128]{1,0:T(8,128)}', space=vmem, size = 0x8000, scoped, tag = 'scratch operand']
  %s0 = inlined_call_operand.vmem [shape: bf16[256,256], index: 0, kind: input, shape index: {}]
  %s1 = inlined_call_operand.hbm [shape: bf16[256,128], index: 1, kind: input, shape index: {}]
  %s2 = inlined_call_operand.hbm [shape: bf16[256,128], index: 2, kind: input, shape index: {}]
  %s3 = inlined_call_operand.vmem [shape: f32[256,1], index: 3, kind: input, shape index: {}]
  %s4 = inlined_call_operand.vmem [shape: f32[1,128], index: 4, kind: input, shape index: {}]
  %s5 = inlined_call_operand.vmem [shape: f32[1,128], index: 5, kind: input, shape index: {}]
  %s6 = inlined_call_operand.hbm [shape: bf16[128,128], index: 6, kind: input, shape index: {}]
  %s7 = inlined_call_operand.vmem [shape: f32[1,128], index: 7, kind: input, shape index: {}]
  %s8 = inlined_call_operand.hbm [shape: bf16[128,128], index: 8, kind: input, shape index: {}]
  %s9 = inlined_call_operand.vmem [shape: f32[1,128], index: 9, kind: input, shape index: {}]
  %s10 = inlined_call_operand.hbm [shape: bf16[256,128], index: 10, kind: output, shape index: {0}]
  %s11 = inlined_call_operand.hbm [shape: f32[4,2,128], index: 11, kind: output, shape index: {1}]
  %12 = xla_tuple %s10, %s11
  %s13 = sld [smem:[#allocation0]]
  $region146: #{tpu_custom_call.1} parent=0
    _
  %s15 = ssub.s32 1, %s13
  %s16 = scalar_select 0, %s15, %s13
  $region1: #{tpu_custom_call.1} parent=0
    #allocation3 [shape = 'u8[32768]{0}', space=vmem, size = 0x8000, scoped, tag = 'input window, operand 0']
    #allocation4 [shape = 'u8[65536]{0}', space=vmem, size = 0x10000, scoped, tag = 'input window, operand 1']
    #allocation5 [shape = 's32[2]{0}', space=sflag, size = 0x8, scoped, tag = 'scoped memory for tpu_custom_call.1']
    #allocation6 [shape = 's32[2]{0}', space=sflag, size = 0x8, scoped, tag = 'scoped memory for tpu_custom_call.1']
    #allocation7 [shape = 'u8[32768]{0}', space=vmem, size = 0x8000, scoped, tag = 'input window, operand 2']
    #allocation8 [shape = 's32[2]{0}', space=sflag, size = 0x8, scoped, tag = 'scoped memory for tpu_custom_call.1']
    #allocation9 [shape = 'u8[32768]{0}', space=vmem, size = 0x8000, scoped, tag = 'input window, operand 6, single buffered']
    #allocation10 [shape = 'u8[32768]{0}', space=vmem, size = 0x8000, scoped, tag = 'input window, operand 8, single buffered']
    #allocation11 [shape = 's32[1]{0}', space=sflag, size = 0x4, scoped, tag = 'scoped memory for tpu_custom_call.1']
    #allocation12 [shape = 'u8[32768]{0}', space=vmem, size = 0x8000, scoped, tag = 'output window, operand 0']
    #allocation13 [shape = 'u8[2048]{0}', space=vmem, size = 0x800, scoped, tag = 'output window, operand 1']
    #allocation14 [shape = 's32[2]{0}', space=sflag, size = 0x8, scoped, tag = 'scoped memory for tpu_custom_call.1']
    %17 = vsyncpa [#allocation5], 0
    %s18 = scalar_lea.sflag [#allocation5], 1
    %19 = vsyncpa %s18, 0
    %20 = vsyncpa [#allocation8], 0
    %s21 = scalar_lea.sflag [#allocation8], 1
    %22 = vsyncpa %s21, 0
    %23 = vsyncpa [#allocation11], 0
    %24 = vsyncpa [#allocation6], 0
    %s25 = scalar_lea.sflag [#allocation6], 1
    %26 = vsyncpa %s25, 0
    %27 = vsyncpa [#allocation14], 0
    %s28 = scalar_lea.sflag [#allocation14], 1
    %29 = vsyncpa %s28, 0
    loop: start=0, step=1, limit=10
    $region2: #{tpu_custom_call.1} parent=1 // loop_pre_header
      _
    $region3: #{tpu_custom_call.1} parent=1 // loop_header
      %s31 = sphi 0, %s35
      %p32 = scmp.ge.s32.totalorder %s31, 10
      %s38 = sphi 0, %s50
      %s39 = sphi 0, %s46
      %s40 = sphi 0, %s38
      %s41 = sphi 0, %s39
      %s42 = sphi 0, %s40
      %s43 = sphi 0, %s41
      %s55 = sphi 0, %s57
      %s58 = sphi 0, %s55
      %s59 = sphi 0, %s58
      %s75 = sphi 0, %s59
      %s81 = sphi 0, %s83
      %s84 = sphi 0, %s81
      %s85 = sphi 0, %s84
      %s101 = sphi 0, %s85
      %s107 = sphi 0, %s109
      %s110 = sphi 0, %s107
      %s111 = sphi 0, %s110
      %s127 = sphi 0, %s111
      %s133 = sphi 0, %s135
      %s136 = sphi 0, %s133
      %s137 = sphi 0, %s136
      %s153 = sphi 0, %s137
      %s157 = sphi 0, %s157
      %s159 = sphi 0, %s157
      %s160 = sphi 0, %s159
      %s174 = sphi 0, %s160
      %s178 = sphi 0, %s178
      %s180 = sphi 0, %s178
      %s181 = sphi 0, %s180
      %s195 = sphi 0, %s181
      %s199 = sphi 0, %s199
      %s201 = sphi 0, %s199
      %s202 = sphi 0, %s201
      %s216 = sphi 0, %s202
      %s220 = sphi 0, %s220
      %s222 = sphi 0, %s220
      %s223 = sphi 0, %s222
      %s237 = sphi 0, %s223
      %s241 = sphi 0, %s241
      %s243 = sphi 0, %s241
      %s244 = sphi 0, %s243
      %s258 = sphi 0, %s244
      %s262 = sphi 0, %s262
      %s264 = sphi 0, %s262
      %s265 = sphi 0, %s264
      %s279 = sphi 0, %s265
      %s285 = sphi 0, %s287
      %s288 = sphi 0, %s285
      %s289 = sphi 0, %s288
      %s305 = sphi 0, %s289
      %s311 = sphi 0, %s313
      %s314 = sphi 0, %s311
      %s315 = sphi 0, %s314
      %s331 = sphi 0, %s315
    $region4: #{tpu_custom_call.1} parent=1 // loop_header_branch
      %34 = sbr.rel (%p32) target = $region8
    $region5: #{tpu_custom_call.1} parent=1 // loop_body
      %s36 = ssub.s32 %s31, 1
      %s37 = ssub.s32 %s31, 2
      %s44 = sadd.s32 1, %s39
      %p45 = scmp.ge.s32.totalorder %s44, 2
      %s46 = scalar_select %p45, 0, %s44
      %s47 = sadd.s32 1, %s38
      %s48 = scalar_select %p45, %s47, %s38
      %p49 = scmp.ge.s32.totalorder %s48, 4
      %s50 = scalar_select %p49, 0, %s48
      %s51 = ssub.s32 %s38, %s50
      %s52 = ssub.s32 %s39, %s46
      %s53 = sor.u32 %s51, %s52
      %p54 = scmp.eq.s32.totalorder %s53, 0
      %s56 = sadd.s32 %s55, 1
      %s57 = scalar_select %p54, %s55, %s56
      %p60 = pneg %p54
      %p61 = scmp.eq.s32.totalorder %s31, 7
      %p62 = por %p60, %p61
      %p63 = scmp.ne.s32.totalorder %s55, %s58
      %p64 = scmp.eq.s32.totalorder %s31, 0
      %p65 = por %p63, %p64
      %p66 = scmp.ne.s32.totalorder %s55, %s58
      %p67 = scmp.eq.s32.totalorder %s36, 7
      %p68 = por %p66, %p67
      %p69 = scmp.ne.s32.totalorder %s58, %s59
      %p70 = scmp.eq.s32.totalorder %s36, 0
      %p71 = por %p69, %p70
      %p72 = scmp.ne.s32.totalorder %s58, %s59
      %p73 = scmp.eq.s32.totalorder %s37, 7
      %p74 = por %p72, %p73
      %p76 = scmp.ne.s32.totalorder %s59, %s75
      %p77 = scmp.eq.s32.totalorder %s37, 0
      %p78 = por %p76, %p77
      %s79 = ssub.s32 %s39, %s46
      %p80 = scmp.eq.s32.totalorder %s79, 0
      %s82 = sadd.s32 %s81, 1
      %s83 = scalar_select %p80, %s81, %s82
      %p86 = pneg %p80
      %p87 = scmp.eq.s32.totalorder %s31, 7
      %p88 = por %p86, %p87
      %p89 = scmp.ne.s32.totalorder %s81, %s84
      %p90 = scmp.eq.s32.totalorder %s31, 0
      %p91 = por %p89, %p90
      %p92 = scmp.ne.s32.totalorder %s81, %s84
      %p93 = scmp.eq.s32.totalorder %s36, 7
      %p94 = por %p92, %p93
      %p95 = scmp.ne.s32.totalorder %s84, %s85
      %p96 = scmp.eq.s32.totalorder %s36, 0
      %p97 = por %p95, %p96
      %p98 = scmp.ne.s32.totalorder %s84, %s85
      %p99 = scmp.eq.s32.totalorder %s37, 7
      %p100 = por %p98, %p99
      %p102 = scmp.ne.s32.totalorder %s85, %s101
      %p103 = scmp.eq.s32.totalorder %s37, 0
      %p104 = por %p102, %p103
      %s105 = ssub.s32 %s38, %s50
      %p106 = scmp.eq.s32.totalorder %s105, 0
      %s108 = sadd.s32 %s107, 1
      %s109 = scalar_select %p106, %s107, %s108
      %p112 = pneg %p106
      %p113 = scmp.eq.s32.totalorder %s31, 7
      %p114 = por %p112, %p113
      %p115 = scmp.ne.s32.totalorder %s107, %s110
      %p116 = scmp.eq.s32.totalorder %s31, 0
      %p117 = por %p115, %p116
      %p118 = scmp.ne.s32.totalorder %s107, %s110
      %p119 = scmp.eq.s32.totalorder %s36, 7
      %p120 = por %p118, %p119
      %p121 = scmp.ne.s32.totalorder %s110, %s111
      %p122 = scmp.eq.s32.totalorder %s36, 0
      %p123 = por %p121, %p122
      %p124 = scmp.ne.s32.totalorder %s110, %s111
      %p125 = scmp.eq.s32.totalorder %s37, 7
      %p126 = por %p124, %p125
      %p128 = scmp.ne.s32.totalorder %s111, %s127
      %p129 = scmp.eq.s32.totalorder %s37, 0
      %p130 = por %p128, %p129
      %s131 = ssub.s32 %s38, %s50
      %p132 = scmp.eq.s32.totalorder %s131, 0
      %s134 = sadd.s32 %s133, 1
      %s135 = scalar_select %p132, %s133, %s134
      %p138 = pneg %p132
      %p139 = scmp.eq.s32.totalorder %s31, 7
      %p140 = por %p138, %p139
      %p141 = scmp.ne.s32.totalorder %s133, %s136
      %p142 = scmp.eq.s32.totalorder %s31, 0
      %p143 = por %p141, %p142
      %p144 = scmp.ne.s32.totalorder %s133, %s136
      %p145 = scmp.eq.s32.totalorder %s36, 7
      %p146 = por %p144, %p145
      %p147 = scmp.ne.s32.totalorder %s136, %s137
      %p148 = scmp.eq.s32.totalorder %s36, 0
      %p149 = por %p147, %p148
      %p150 = scmp.ne.s32.totalorder %s136, %s137
      %p151 = scmp.eq.s32.totalorder %s37, 7
      %p152 = por %p150, %p151
      %p154 = scmp.ne.s32.totalorder %s137, %s153
      %p155 = scmp.eq.s32.totalorder %s37, 0
      %p156 = por %p154, %p155
      %s158 = sadd.s32 %s157, 1
      %p161 = scmp.eq.s32.totalorder %s31, 7
      %p162 = scmp.ne.s32.totalorder %s157, %s159
      %p163 = scmp.eq.s32.totalorder %s31, 0
      %p164 = por %p162, %p163
      %p165 = scmp.ne.s32.totalorder %s157, %s159
      %p166 = scmp.eq.s32.totalorder %s36, 7
      %p167 = por %p165, %p166
      %p168 = scmp.ne.s32.totalorder %s159, %s160
      %p169 = scmp.eq.s32.totalorder %s36, 0
      %p170 = por %p168, %p169
      %p171 = scmp.ne.s32.totalorder %s159, %s160
      %p172 = scmp.eq.s32.totalorder %s37, 7
      %p173 = por %p171, %p172
      %p175 = scmp.ne.s32.totalorder %s160, %s174
      %p176 = scmp.eq.s32.totalorder %s37, 0
      %p177 = por %p175, %p176
      %s179 = sadd.s32 %s178, 1
      %p182 = scmp.eq.s32.totalorder %s31, 7
      %p183 = scmp.ne.s32.totalorder %s178, %s180
      %p184 = scmp.eq.s32.totalorder %s31, 0
      %p185 = por %p183, %p184
      %p186 = scmp.ne.s32.totalorder %s178, %s180
      %p187 = scmp.eq.s32.totalorder %s36, 7
      %p188 = por %p186, %p187
      %p189 = scmp.ne.s32.totalorder %s180, %s181
      %p190 = scmp.eq.s32.totalorder %s36, 0
      %p191 = por %p189, %p190
      %p192 = scmp.ne.s32.totalorder %s180, %s181
      %p193 = scmp.eq.s32.totalorder %s37, 7
      %p194 = por %p192, %p193
      %p196 = scmp.ne.s32.totalorder %s181, %s195
      %p197 = scmp.eq.s32.totalorder %s37, 0
      %p198 = por %p196, %p197
      %s200 = sadd.s32 %s199, 1
      %p203 = scmp.eq.s32.totalorder %s31, 7
      %p204 = scmp.ne.s32.totalorder %s199, %s201
      %p205 = scmp.eq.s32.totalorder %s31, 0
      %p206 = por %p204, %p205
      %p207 = scmp.ne.s32.totalorder %s199, %s201
      %p208 = scmp.eq.s32.totalorder %s36, 7
      %p209 = por %p207, %p208
      %p210 = scmp.ne.s32.totalorder %s201, %s202
      %p211 = scmp.eq.s32.totalorder %s36, 0
      %p212 = por %p210, %p211
      %p213 = scmp.ne.s32.totalorder %s201, %s202
      %p214 = scmp.eq.s32.totalorder %s37, 7
      %p215 = por %p213, %p214
      %p217 = scmp.ne.s32.totalorder %s202, %s216
      %p218 = scmp.eq.s32.totalorder %s37, 0
      %p219 = por %p217, %p218
      %s221 = sadd.s32 %s220, 1
      %p224 = scmp.eq.s32.totalorder %s31, 7
      %p225 = scmp.ne.s32.totalorder %s220, %s222
      %p226 = scmp.eq.s32.totalorder %s31, 0
      %p227 = por %p225, %p226
      %p228 = scmp.ne.s32.totalorder %s220, %s222
      %p229 = scmp.eq.s32.totalorder %s36, 7
      %p230 = por %p228, %p229
      %p231 = scmp.ne.s32.totalorder %s222, %s223
      %p232 = scmp.eq.s32.totalorder %s36, 0
      %p233 = por %p231, %p232
      %p234 = scmp.ne.s32.totalorder %s222, %s223
      %p235 = scmp.eq.s32.totalorder %s37, 7
      %p236 = por %p234, %p235
      %p238 = scmp.ne.s32.totalorder %s223, %s237
      %p239 = scmp.eq.s32.totalorder %s37, 0
      %p240 = por %p238, %p239
      %s242 = sadd.s32 %s241, 1
      %p245 = scmp.eq.s32.totalorder %s31, 7
      %p246 = scmp.ne.s32.totalorder %s241, %s243
      %p247 = scmp.eq.s32.totalorder %s31, 0
      %p248 = por %p246, %p247
      %p249 = scmp.ne.s32.totalorder %s241, %s243
      %p250 = scmp.eq.s32.totalorder %s36, 7
      %p251 = por %p249, %p250
      %p252 = scmp.ne.s32.totalorder %s243, %s244
      %p253 = scmp.eq.s32.totalorder %s36, 0
      %p254 = por %p252, %p253
      %p255 = scmp.ne.s32.totalorder %s243, %s244
      %p256 = scmp.eq.s32.totalorder %s37, 7
      %p257 = por %p255, %p256
      %p259 = scmp.ne.s32.totalorder %s244, %s258
      %p260 = scmp.eq.s32.totalorder %s37, 0
      %p261 = por %p259, %p260
      %s263 = sadd.s32 %s262, 1
      %p266 = scmp.eq.s32.totalorder %s31, 7
      %p267 = scmp.ne.s32.totalorder %s262, %s264
      %p268 = scmp.eq.s32.totalorder %s31, 0
      %p269 = por %p267, %p268
      %p270 = scmp.ne.s32.totalorder %s262, %s264
      %p271 = scmp.eq.s32.totalorder %s36, 7
      %p272 = por %p270, %p271
      %p273 = scmp.ne.s32.totalorder %s264, %s265
      %p274 = scmp.eq.s32.totalorder %s36, 0
      %p275 = por %p273, %p274
      %p276 = scmp.ne.s32.totalorder %s264, %s265
      %p277 = scmp.eq.s32.totalorder %s37, 7
      %p278 = por %p276, %p277
      %p280 = scmp.ne.s32.totalorder %s265, %s279
      %p281 = scmp.eq.s32.totalorder %s37, 0
      %p282 = por %p280, %p281
      %s283 = ssub.s32 %s38, %s50
      %p284 = scmp.eq.s32.totalorder %s283, 0
      %s286 = sadd.s32 %s285, 1
      %s287 = scalar_select %p284, %s285, %s286
      %p290 = pneg %p284
      %p291 = scmp.eq.s32.totalorder %s31, 7
      %p292 = por %p290, %p291
      %p293 = scmp.ne.s32.totalorder %s285, %s288
      %p294 = scmp.eq.s32.totalorder %s31, 0
      %p295 = por %p293, %p294
      %p296 = scmp.ne.s32.totalorder %s285, %s288
      %p297 = scmp.eq.s32.totalorder %s36, 7
      %p298 = por %p296, %p297
      %p299 = scmp.ne.s32.totalorder %s288, %s289
      %p300 = scmp.eq.s32.totalorder %s36, 0
      %p301 = por %p299, %p300
      %p302 = scmp.ne.s32.totalorder %s288, %s289
      %p303 = scmp.eq.s32.totalorder %s37, 7
      %p304 = por %p302, %p303
      %p306 = scmp.ne.s32.totalorder %s289, %s305
      %p307 = scmp.eq.s32.totalorder %s37, 0
      %p308 = por %p306, %p307
      %s309 = ssub.s32 %s38, %s50
      %p310 = scmp.eq.s32.totalorder %s309, 0
      %s312 = sadd.s32 %s311, 1
      %s313 = scalar_select %p310, %s311, %s312
      %p316 = pneg %p310
      %p317 = scmp.eq.s32.totalorder %s31, 7
      %p318 = por %p316, %p317
      %p319 = scmp.ne.s32.totalorder %s311, %s314
      %p320 = scmp.eq.s32.totalorder %s31, 0
      %p321 = por %p319, %p320
      %p322 = scmp.ne.s32.totalorder %s311, %s314
      %p323 = scmp.eq.s32.totalorder %s36, 7
      %p324 = por %p322, %p323
      %p325 = scmp.ne.s32.totalorder %s314, %s315
      %p326 = scmp.eq.s32.totalorder %s36, 0
      %p327 = por %p325, %p326
      %p328 = scmp.ne.s32.totalorder %s314, %s315
      %p329 = scmp.eq.s32.totalorder %s37, 7
      %p330 = por %p328, %p329
      %p332 = scmp.ne.s32.totalorder %s315, %s331
      %p333 = scmp.eq.s32.totalorder %s37, 0
      %p334 = por %p332, %p333
      %p335 = scmp.le.s32.totalorder 1, %s31
      %p336 = scmp.lt.s32.totalorder %s31, 9
      %p337 = pnand %p335, %p336
      %p338 = pneg %p337
      // Predicated region
      $region9: #{tpu_custom_call.1} parent=5 // pred_check
        _
      $region10: #{tpu_custom_call.1} parent=5 // pred_check_branch
        %340 = sbr.rel (%p337) target = $region12
      $region11: #{tpu_custom_call.1} parent=5 // pred_region
        %s341 = ssub.s32 %s31, 1
        // Predicated region
        $region13: #{tpu_custom_call.1} parent=11 // pred_check
          %p342 = pneg %p170
        $region14: #{tpu_custom_call.1} parent=11 // pred_check_branch
          %344 = sbr.rel (%p342) target = $region16
        $region15: #{tpu_custom_call.1} parent=11 // pred_region
          _
        $region16: #{tpu_custom_call.1} parent=11 // pred_fallthru
          _
        // Predicated region
        $region17: #{tpu_custom_call.1} parent=11 // pred_check
          %p345 = pneg %p191
        $region18: #{tpu_custom_call.1} parent=11 // pred_check_branch
          %347 = sbr.rel (%p345) target = $region20
        $region19: #{tpu_custom_call.1} parent=11 // pred_region
          _
        $region20: #{tpu_custom_call.1} parent=11 // pred_fallthru
          _
        // Predicated region
        $region21: #{tpu_custom_call.1} parent=11 // pred_check
          %p348 = pneg %p212
        $region22: #{tpu_custom_call.1} parent=11 // pred_check_branch
          %350 = sbr.rel (%p348) target = $region24
        $region23: #{tpu_custom_call.1} parent=11 // pred_region
          %s352 = ssub.s32 1024, 1024
          %353 = vsyncadd [#allocation8], %s352
          %s354 = sshll.u32 [#allocation9], 4
          %s355 = int_to_ptr.vmem [resolvable:$true] %s354
          %360 = dma.hbm_to_vmem [thread:$0]  %s6, 1024, %s355, [#allocation8], 64, 64, 4
        $region24: #{tpu_custom_call.1} parent=11 // pred_fallthru
          _
        // Predicated region
        $region25: #{tpu_custom_call.1} parent=11 // pred_check
          %p361 = pneg %p233
        $region26: #{tpu_custom_call.1} parent=11 // pred_check_branch
          %363 = sbr.rel (%p361) target = $region28
        $region27: #{tpu_custom_call.1} parent=11 // pred_region
          _
        $region28: #{tpu_custom_call.1} parent=11 // pred_fallthru
          _
        // Predicated region
        $region29: #{tpu_custom_call.1} parent=11 // pred_check
          %p364 = pneg %p254
        $region30: #{tpu_custom_call.1} parent=11 // pred_check_branch
          %366 = sbr.rel (%p364) target = $region32
        $region31: #{tpu_custom_call.1} parent=11 // pred_region
          %s368 = ssub.s32 1024, 1024
          %369 = vsyncadd [#allocation11], %s368
          %s370 = sshll.u32 [#allocation10], 4
          %s371 = int_to_ptr.vmem [resolvable:$true] %s370
          %376 = dma.hbm_to_vmem [thread:$0]  %s8, 1024, %s371, [#allocation11], 64, 64, 4
        $region32: #{tpu_custom_call.1} parent=11 // pred_fallthru
          _
        // Predicated region
        $region33: #{tpu_custom_call.1} parent=11 // pred_check
          %p377 = pneg %p275
        $region34: #{tpu_custom_call.1} parent=11 // pred_check_branch
          %379 = sbr.rel (%p377) target = $region36
        $region35: #{tpu_custom_call.1} parent=11 // pred_region
          _
        $region36: #{tpu_custom_call.1} parent=11 // pred_fallthru
          _
      $region12: #{tpu_custom_call.1} parent=5 // pred_fallthru
        _
      %p380 = scmp.lt.s32.totalorder %s31, 8
      // Predicated region
      $region37: #{tpu_custom_call.1} parent=5 // pred_check
        %p381 = pneg %p380
      $region38: #{tpu_custom_call.1} parent=5 // pred_check_branch
        %383 = sbr.rel (%p381) target = $region40
      $region39: #{tpu_custom_call.1} parent=5 // pred_region
        // Predicated region
        $region41: #{tpu_custom_call.1} parent=39 // pred_check
          %p384 = pneg %p65
        $region42: #{tpu_custom_call.1} parent=39 // pred_check_branch
          %386 = sbr.rel (%p384) target = $region44
        $region43: #{tpu_custom_call.1} parent=39 // pred_region
          %s387 = sand.u32 %s55, 1
          %s388 = sand.u32 %s55, 1
          %s389 = smul.addr %s388, 32
          %s390 = scalar_lea.vmem [#allocation3], %s389
          %s391 = smul.u32 8, %s38
          %s392 = smul.addr %s391, 2
          %s393 = sadd.s32 %s39, %s392
          %s394 = smul.addr %s393, 4
          %s395 = scalar_lea.vmem %s0, %s394
          // Predicated region
          $region45: #{tpu_custom_call.1} parent=43 // pred_check
            _
          $region46: #{tpu_custom_call.1} parent=43 // pred_check_branch
            %397 = sbr.rel (0) target = $region48
          $region47: #{tpu_custom_call.1} parent=43 // pred_region
            // Predicated region
            $region49: #{tpu_custom_call.1} parent=47 // pred_check
              _
            $region50: #{tpu_custom_call.1} parent=47 // pred_check_branch
              %399 = sbr.rel target = $region52
            $region51: #{tpu_custom_call.1} parent=47 // pred_region
              // Predicated region
              $region64: #{tpu_custom_call.1} parent=51 // pred_check
                _
              $region65: #{tpu_custom_call.1} parent=51 // pred_check_branch
                %429 = sbr.rel (0) target = $region67
              $region66: #{tpu_custom_call.1} parent=51 // pred_region
                loop: start=0, step=1, limit=1
                $region68: #{tpu_custom_call.1} parent=66 // loop_pre_header
                  _
                $region69: #{tpu_custom_call.1} parent=66 // loop_header
                  %s431 = sphi 0, %s435
                  %p432 = scmp.ge.s32.totalorder %s431, 1
                  %s436 = sphi %s395, %s395
                  %s437 = sphi %s390, %s390
                $region70: #{tpu_custom_call.1} parent=66 // loop_header_branch
                  %434 = sbr.rel (%p432) target = $region74
                $region71: #{tpu_custom_call.1} parent=66 // loop_body
                  _
                $region72: #{tpu_custom_call.1} parent=66 // loop_footer
                  %s435 = sadd.s32 1, %s431
                $region73: #{tpu_custom_call.1} parent=66 // loop_footer_branch
                  %430 = sbr.rel target = $region69
                $region74: #{tpu_custom_call.1} parent=66 // loop_exit
                  _
                %s439 = ssub.s32 16, 1
                loop: start=0, step=1, limit=1
                $region75: #{tpu_custom_call.1} parent=66 // loop_pre_header
                  _
                $region76: #{tpu_custom_call.1} parent=66 // loop_header
                  %s441 = sphi 0, %s445
                  %p442 = scmp.ge.s32.totalorder %s441, 1
                  %s446 = sphi %s395, %s395
                  %s447 = sphi %s390, %s390
                $region77: #{tpu_custom_call.1} parent=66 // loop_header_branch
                  %444 = sbr.rel (%p442) target = $region81
                $region78: #{tpu_custom_call.1} parent=66 // loop_body
                  %v448 = vld [vmem:[%s446] sm:%s439]
                  %449 = vst [vmem:[%s447] sm:%s439] %v448
                  %v450 = vld [vmem:[%s446 + $0x8] sm:%s439]
                  %451 = vst [vmem:[%s447 + $0x4] sm:%s439] %v450
                  %v452 = vld [vmem:[%s446 + $0x10] sm:%s439]
                  %453 = vst [vmem:[%s447 + $0x8] sm:%s439] %v452
                  %v454 = vld [vmem:[%s446 + $0x18] sm:%s439]
                  %455 = vst [vmem:[%s447 + $0xc] sm:%s439] %v454
                  %v456 = vld [vmem:[%s446 + $0x20] sm:%s439]
                  %457 = vst [vmem:[%s447 + $0x10] sm:%s439] %v456
                  %v458 = vld [vmem:[%s446 + $0x28] sm:%s439]
                  %459 = vst [vmem:[%s447 + $0x14] sm:%s439] %v458
                  %v460 = vld [vmem:[%s446 + $0x30] sm:%s439]
                  %461 = vst [vmem:[%s447 + $0x18] sm:%s439] %v460
                  %v462 = vld [vmem:[%s446 + $0x38] sm:%s439]
                  %463 = vst [vmem:[%s447 + $0x1c] sm:%s439] %v462
                $region79: #{tpu_custom_call.1} parent=66 // loop_footer
                  %s445 = sadd.s32 1, %s441
                $region80: #{tpu_custom_call.1} parent=66 // loop_footer_branch
                  %440 = sbr.rel target = $region76
                $region81: #{tpu_custom_call.1} parent=66 // loop_exit
                  _
              $region67: #{tpu_custom_call.1} parent=51 // pred_fallthru
                _
            $region52: #{tpu_custom_call.1} parent=47 // pred_fallthru
              _
            // Predicated region
            $region53: #{tpu_custom_call.1} parent=47 // pred_check
              _
            $region54: #{tpu_custom_call.1} parent=47 // pred_check_branch
              %401 = sbr.rel (0) target = $region56
            $region55: #{tpu_custom_call.1} parent=47 // pred_region
              %s403 = ssub.s32 16, 1
              loop: start=0, step=1, limit=1
              $region57: #{tpu_custom_call.1} parent=55 // loop_pre_header
                _
              $region58: #{tpu_custom_call.1} parent=55 // loop_header
                %s405 = sphi 0, %s409
                %p406 = scmp.ge.s32.totalorder %s405, 1
                %s410 = sphi %s395, %s395
                %s411 = sphi %s390, %s390
              $region59: #{tpu_custom_call.1} parent=55 // loop_header_branch
                %408 = sbr.rel (%p406) target = $region63
              $region60: #{tpu_custom_call.1} parent=55 // loop_body
                %v412 = vld [vmem:[%s410] sm:%s403]
                %413 = vst [vmem:[%s411] sm:%s403] %v412
                %v414 = vld [vmem:[%s410 + $0x8] sm:%s403]
                %415 = vst [vmem:[%s411 + $0x4] sm:%s403] %v414
                %v416 = vld [vmem:[%s410 + $0x10] sm:%s403]
                %417 = vst [vmem:[%s411 + $0x8] sm:%s403] %v416
                %v418 = vld [vmem:[%s410 + $0x18] sm:%s403]
                %419 = vst [vmem:[%s411 + $0xc] sm:%s403] %v418
                %v420 = vld [vmem:[%s410 + $0x20] sm:%s403]
                %421 = vst [vmem:[%s411 + $0x10] sm:%s403] %v420
                %v422 = vld [vmem:[%s410 + $0x28] sm:%s403]
                %423 = vst [vmem:[%s411 + $0x14] sm:%s403] %v422
                %v424 = vld [vmem:[%s410 + $0x30] sm:%s403]
                %425 = vst [vmem:[%s411 + $0x18] sm:%s403] %v424
                %v426 = vld [vmem:[%s410 + $0x38] sm:%s403]
                %427 = vst [vmem:[%s411 + $0x1c] sm:%s403] %v426
              $region61: #{tpu_custom_call.1} parent=55 // loop_footer
                %s409 = sadd.s32 1, %s405
              $region62: #{tpu_custom_call.1} parent=55 // loop_footer_branch
                %404 = sbr.rel target = $region58
              $region63: #{tpu_custom_call.1} parent=55 // loop_exit
                _
            $region56: #{tpu_custom_call.1} parent=47 // pred_fallthru
              _
          $region48: #{tpu_custom_call.1} parent=43 // pred_fallthru
            _
          %464 = vnop
        $region44: #{tpu_custom_call.1} parent=39 // pred_fallthru
          _
        // Predicated region
        $region82: #{tpu_custom_call.1} parent=39 // pred_check
          %p465 = pneg %p91
        $region83: #{tpu_custom_call.1} parent=39 // pred_check_branch
          %467 = sbr.rel (%p465) target = $region85
        $region84: #{tpu_custom_call.1} parent=39 // pred_region
          %s468 = sand.u32 %s81, 1
          %s469 = scalar_lea.sflag [#allocation5], %s468
          %s470 = sand.u32 %s81, 1
          %s471 = smul.addr %s470, 64
          %s472 = scalar_lea.vmem [#allocation4], %s471
          %s473 = smul.u32 16, %s39
          %s475 = ssub.s32 1024, 1024
          %476 = vsyncadd %s469, %s475
          %s477 = smul.addr %s473, 64
          %s478 = scalar_lea.hbm %s1, %s477
          %s479 = sshll.u32 %s472, 4
          %s480 = int_to_ptr.vmem [resolvable:$true] %s479
          %485 = dma.hbm_to_vmem [thread:$0]  %s478, 1024, %s480, %s469, 64, 64, 4
        $region85: #{tpu_custom_call.1} parent=39 // pred_fallthru
          _
        // Predicated region
        $region86: #{tpu_custom_call.1} parent=39 // pred_check
          %p486 = pneg %p117
        $region87: #{tpu_custom_call.1} parent=39 // pred_check_branch
          %488 = sbr.rel (%p486) target = $region89
        $region88: #{tpu_custom_call.1} parent=39 // pred_region
          %s489 = sand.u32 %s31, 1
          %s490 = scalar_lea.sflag [#allocation8], %s489
          %s491 = sand.u32 %s107, 1
          %s492 = smul.addr %s491, 32
          %s493 = scalar_lea.vmem [#allocation7], %s492
          %s494 = smul.u32 8, %s38
          %s496 = ssub.s32 512, 512
          %497 = vsyncadd %s490, %s496
          %s498 = smul.addr %s494, 64
          %s499 = scalar_lea.hbm %s2, %s498
          %s500 = sshll.u32 %s493, 4
          %s501 = int_to_ptr.vmem [resolvable:$true] %s500
          %506 = dma.hbm_to_vmem [thread:$0]  %s499, 512, %s501, %s490, 64, 64, 4
        $region89: #{tpu_custom_call.1} parent=39 // pred_fallthru
          _
        // Predicated region
        $region90: #{tpu_custom_call.1} parent=39 // pred_check
          %p507 = pneg %p143
        $region91: #{tpu_custom_call.1} parent=39 // pred_check_branch
          %509 = sbr.rel (%p507) target = $region93
        $region92: #{tpu_custom_call.1} parent=39 // pred_region
          %s510 = smul.u32 8, %s38
          %p511 = scmp.lt.s32.totalorder %s510, 31
          %s512 = scalar_select %p511, %s510, 31
          %s513 = smul.addr %s512, 8
          %s514 = scalar_lea.vmem %s3, %s513
          %s515 = smul.u32 8, %s38
        $region93: #{tpu_custom_call.1} parent=39 // pred_fallthru
          _
      $region40: #{tpu_custom_call.1} parent=5 // pred_fallthru
        _
      %p516 = scmp.le.s32.totalorder 1, %s31
      %p517 = scmp.lt.s32.totalorder %s31, 9
      %p518 = pnand %p516, %p517
      %p519 = pneg %p518
      // Predicated region
      $region94: #{tpu_custom_call.1} parent=5 // pred_check
        _
      $region95: #{tpu_custom_call.1} parent=5 // pred_check_branch
        %521 = sbr.rel (%p518) target = $region97
      $region96: #{tpu_custom_call.1} parent=5 // pred_region
        %s522 = ssub.s32 %s31, 1
        %s523 = sand.u32 %s58, 1
        %s524 = sand.u32 %s58, 1
        %s525 = smul.addr %s524, 32
        %s526 = scalar_lea.vmem [#allocation3], %s525
        // Predicated region
        $region98: #{tpu_custom_call.1} parent=96 // pred_check
          %p527 = pneg %p71
        $region99: #{tpu_custom_call.1} parent=96 // pred_check_branch
          %529 = sbr.rel (%p527) target = $region101
        $region100: #{tpu_custom_call.1} parent=96 // pred_region
          _
        $region101: #{tpu_custom_call.1} parent=96 // pred_fallthru
          _
        %s530 = sand.u32 %s84, 1
        %s531 = scalar_lea.sflag [#allocation5], %s530
        %s532 = sand.u32 %s84, 1
        %s533 = smul.addr %s532, 64
        %s534 = scalar_lea.vmem [#allocation4], %s533
        // Predicated region
        $region102: #{tpu_custom_call.1} parent=96 // pred_check
          %p535 = pneg %p97
        $region103: #{tpu_custom_call.1} parent=96 // pred_check_branch
          %537 = sbr.rel (%p535) target = $region105
        $region104: #{tpu_custom_call.1} parent=96 // pred_region
          %538 = dma.done %s531, 1024
        $region105: #{tpu_custom_call.1} parent=96 // pred_fallthru
          _
        %s539 = sand.u32 %s36, 1
        %s540 = scalar_lea.sflag [#allocation8], %s539
        %s541 = sand.u32 %s110, 1
        %s542 = smul.addr %s541, 32
        %s543 = scalar_lea.vmem [#allocation7], %s542
        // Predicated region
        $region106: #{tpu_custom_call.1} parent=96 // pred_check
          %p544 = pneg %p123
        $region107: #{tpu_custom_call.1} parent=96 // pred_check_branch
          %546 = sbr.rel (%p544) target = $region109
        $region108: #{tpu_custom_call.1} parent=96 // pred_region
          %547 = dma.done %s540, 512
        $region109: #{tpu_custom_call.1} parent=96 // pred_fallthru
          _
        // Predicated region
        $region110: #{tpu_custom_call.1} parent=96 // pred_check
          %p548 = pneg %p212
        $region111: #{tpu_custom_call.1} parent=96 // pred_check_branch
          %550 = sbr.rel (%p548) target = $region113
        $region112: #{tpu_custom_call.1} parent=96 // pred_region
          %551 = dma.done [#allocation8], 1024
        $region113: #{tpu_custom_call.1} parent=96 // pred_fallthru
          _
        // Predicated region
        $region114: #{tpu_custom_call.1} parent=96 // pred_check
          %p552 = pneg %p254
        $region115: #{tpu_custom_call.1} parent=96 // pred_check_branch
          %554 = sbr.rel (%p552) target = $region117
        $region116: #{tpu_custom_call.1} parent=96 // pred_region
          %555 = dma.done [#allocation11], 1024
        $region117: #{tpu_custom_call.1} parent=96 // pred_fallthru
          _
        %s556 = sand.u32 %s58, 1
        %s557 = sand.u32 %s58, 1
        %s558 = smul.addr %s557, 32
        %s559 = scalar_lea.vmem [#allocation3], %s558
        %p560 = pneg %p71
        %p561 = pneg %p68
        %s562 = sand.u32 %s84, 1
        %s563 = scalar_lea.sflag [#allocation5], %s562
        %s564 = sand.u32 %s84, 1
        %s565 = smul.addr %s564, 64
        %s566 = scalar_lea.vmem [#allocation4], %s565
        %p567 = pneg %p97
        %p568 = pneg %p94
        %s569 = sand.u32 %s36, 1
        %s570 = scalar_lea.sflag [#allocation8], %s569
        %s571 = sand.u32 %s110, 1
        %s572 = smul.addr %s571, 32
        %s573 = scalar_lea.vmem [#allocation7], %s572
        %p574 = pneg %p123
        %p575 = pneg %p120
        %s576 = smul.u32 8, %s40
        %p577 = scmp.lt.s32.totalorder %s576, 31
        %s578 = scalar_select %p577, %s576, 31
        %s579 = smul.addr %s578, 8
        %s580 = scalar_lea.vmem %s3, %s579
        %p581 = pneg %p149
        %p582 = pneg %p146
        %p583 = pneg %p170
        %p584 = pneg %p167
        %p585 = pneg %p191
        %p586 = pneg %p188
        %p587 = pneg %p212
        %p588 = pneg %p209
        %p589 = pneg %p233
        %p590 = pneg %p230
        %p591 = pneg %p254
        %p592 = pneg %p251
        %p593 = pneg %p275
        %p594 = pneg %p272
        %p595 = pneg %p301
        %p596 = pneg %p298
        %s597 = sand.u32 %s288, 1
        %s598 = scalar_lea.sflag [#allocation6], %s597
        %s599 = sand.u32 %s288, 1
        %s600 = smul.addr %s599, 32
        %s601 = scalar_lea.vmem [#allocation12], %s600
        %p602 = pneg %p327
        %p603 = pneg %p324
        %s604 = sand.u32 %s314, 1
        %s605 = scalar_lea.sflag [#allocation14], %s604
        %s606 = sand.u32 %s314, 1
        %s607 = smul.addr %s606, 2
        %s608 = scalar_lea.vmem [#allocation13], %s607
        %s609 = smul.u32 8, %s40
        %s610 = smul.u32 16, %s41
        %s611 = smul.u32 8, %s40
        %s612 = smul.u32 8, %s40
        %p613 = scmp.lt.s32.totalorder %s612, 31
        %s614 = scalar_select %p613, %s612, 31
        %s615 = smul.addr %s614, 8
        %s616 = scalar_lea.vmem %s3, %s615
        %s617 = smul.u32 8, %s40
        %s618 = smul.u32 8, %s40
        %p620 = scmp.eq.s32.totalorder %s41, 0
        // Predicated region
        $region118: #{tpu_custom_call.1} parent=96 // pred_check
          %p621 = pneg %p620
        $region119: #{tpu_custom_call.1} parent=96 // pred_check_branch
          %623 = sbr.rel (%p621) target = $region121
        $region120: #{tpu_custom_call.1} parent=96 // pred_region
          %624 = vst [vmem:[#allocation2] sm:$0xff] 0.0
          %625 = vst [vmem:[#allocation2 + $0x8] sm:$0xff] 0.0
          %626 = vst [vmem:[#allocation2 + $0x10] sm:$0xff] 0.0
          %627 = vst [vmem:[#allocation2 + $0x18] sm:$0xff] 0.0
          %628 = vst [vmem:[#allocation2 + $0x20] sm:$0xff] 0.0
          %629 = vst [vmem:[#allocation2 + $0x28] sm:$0xff] 0.0
          %630 = vst [vmem:[#allocation2 + $0x30] sm:$0xff] 0.0
          %631 = vst [vmem:[#allocation2 + $0x38] sm:$0xff] 0.0
        $region121: #{tpu_custom_call.1} parent=96 // pred_fallthru
          _
        %v632 = vld [vmem:[%s534] sm:$0xf]
        %v633 = vld [vmem:[%s534 + $0x4] sm:$0xf]
        %v634 = vld [vmem:[%s534 + $0x8] sm:$0xf]
        %v635 = vld [vmem:[%s534 + $0xc] sm:$0xf]
        %v636 = vld [vmem:[%s534 + $0x10] sm:$0xf]
        %v637 = vld [vmem:[%s534 + $0x14] sm:$0xf]
        %v638 = vld [vmem:[%s534 + $0x18] sm:$0xf]
        %v639 = vld [vmem:[%s534 + $0x1c] sm:$0xf]
        %v640 = vld [vmem:[%s534 + $0x20] sm:$0xf]
        %v641 = vld [vmem:[%s534 + $0x24] sm:$0xf]
        %v642 = vld [vmem:[%s534 + $0x28] sm:$0xf]
        %v643 = vld [vmem:[%s534 + $0x2c] sm:$0xf]
        %v644 = vld [vmem:[%s534 + $0x30] sm:$0xf]
        %v645 = vld [vmem:[%s534 + $0x34] sm:$0xf]
        %v646 = vld [vmem:[%s534 + $0x38] sm:$0xf]
        %v647 = vld [vmem:[%s534 + $0x3c] sm:$0xf]
        %v648 = vld [vmem:[#allocation2] sm:$0xff]
        %v649 = vld [vmem:[#allocation2 + $0x8] sm:$0xff]
        %v650 = vld [vmem:[#allocation2 + $0x10] sm:$0xff]
        %v651 = vld [vmem:[#allocation2 + $0x18] sm:$0xff]
        %v652 = vld [vmem:[#allocation2 + $0x20] sm:$0xff]
        %v653 = vld [vmem:[#allocation2 + $0x28] sm:$0xff]
        %v654 = vld [vmem:[#allocation2 + $0x30] sm:$0xff]
        %v655 = vld [vmem:[#allocation2 + $0x38] sm:$0xff]
        %v656 = vld [vmem:[%s526] sm:$0xf]
        %v657 = vld [vmem:[%s526 + $0x4] sm:$0xf]
        %v658 = vld [vmem:[%s526 + $0x8] sm:$0xf]
        %v659 = vld [vmem:[%s526 + $0xc] sm:$0xf]
        %v660 = vld [vmem:[%s526 + $0x10] sm:$0xf]
        %v661 = vld [vmem:[%s526 + $0x14] sm:$0xf]
        %v662 = vld [vmem:[%s526 + $0x18] sm:$0xf]
        %v663 = vld [vmem:[%s526 + $0x1c] sm:$0xf]
        %v672 = vunpack.c.l.b16 %v656
        %v673 = vunpack.c.l.b16 %v657
        %v674 = vunpack.c.l.b16 %v658
        %v675 = vunpack.c.l.b16 %v659
        %v676 = vunpack.c.l.b16 %v660
        %v677 = vunpack.c.l.b16 %v661
        %v678 = vunpack.c.l.b16 %v662
        %v679 = vunpack.c.l.b16 %v663
        %v680 = vpack.c.b16 %v673, %v672
        %v681 = vpack.c.b16 %v675, %v674
        %v682 = vpack.c.b16 %v677, %v676
        %v683 = vpack.c.b16 %v679, %v678
        %v704 = vunpack.c.l.b16 %v632
        %v705 = vunpack.c.l.b16 %v633
        %v706 = vunpack.c.l.b16 %v634
        %v707 = vunpack.c.l.b16 %v635
        %v708 = vunpack.c.l.b16 %v636
        %v709 = vunpack.c.l.b16 %v637
        %v710 = vunpack.c.l.b16 %v638
        %v711 = vunpack.c.l.b16 %v639
        %v712 = vunpack.c.l.b16 %v640
        %v713 = vunpack.c.l.b16 %v641
        %v714 = vunpack.c.l.b16 %v642
        %v715 = vunpack.c.l.b16 %v643
        %v716 = vunpack.c.l.b16 %v644
        %v717 = vunpack.c.l.b16 %v645
        %v718 = vunpack.c.l.b16 %v646
        %v719 = vunpack.c.l.b16 %v647
        %v720 = vpack.c.b16 %v705, %v704
        %v721 = vpack.c.b16 %v707, %v706
        %v722 = vpack.c.b16 %v709, %v708
        %v723 = vpack.c.b16 %v711, %v710
        %v724 = vpack.c.b16 %v713, %v712
        %v725 = vpack.c.b16 %v715, %v714
        %v726 = vpack.c.b16 %v717, %v716
        %v727 = vpack.c.b16 %v719, %v718
        %736 = vmatprep.subr.bf16.mxu0 0
        %737 = vmatpush1.bf16.msra.mxu0 %v727
        %738 = vmatprep.subr.bf16.mxu0 0
        %739 = vmatpush1.bf16.msra.mxu0 %v726
        %740 = vmatprep.subr.bf16.mxu0 0
        %741 = vmatpush1.bf16.msra.mxu0 %v725
        %742 = vmatprep.subr.bf16.mxu0 0
        %743 = vmatpush1.bf16.msra.mxu0 %v724
        %744 = vmatprep.subr.bf16.mxu0 0
        %745 = vmatpush1.bf16.msra.mxu0 %v723
        %746 = vmatprep.subr.bf16.mxu0 0
        %747 = vmatpush1.bf16.msra.mxu0 %v722
        %748 = vmatprep.subr.bf16.mxu0 0
        %749 = vmatpush1.bf16.msra.mxu0 %v721
        %750 = vmatprep.subr.bf16.mxu0 0
        %751 = vmatpush1.bf16.msra.mxu0 %v720
        %752 = vmatprep.subr.bf16.mxu0 0
        %753 = vmatpush2.bf16.msra.mxu0 0
        %754 = vmatprep.subr.bf16.mxu0 0
        %755 = vmatpush2.bf16.msra.mxu0 0
        %756 = vmatprep.subr.bf16.mxu0 0
        %757 = vmatpush2.bf16.msra.mxu0 0
        %758 = vmatprep.subr.bf16.mxu0 0
        %759 = vmatpush2.bf16.msra.mxu0 0
        %760 = vmatprep.subr.bf16.mxu0 0
        %761 = vmatpush2.bf16.msra.mxu0 0
        %762 = vmatprep.subr.bf16.mxu0 0
        %763 = vmatpush2.bf16.msra.mxu0 0
        %764 = vmatprep.subr.bf16.mxu0 0
        %765 = vmatpush2.bf16.msra.mxu0 0
        %766 = vmatprep.subr.bf16.mxu0 0
        %767 = vmatpush2.bf16.msra.mxu0 0
        %768 = vmatprep.mubr.bf16.mxu0 0
        %769 = vmatmul.mubr.bf16.gmra.mxu0 %v680
        %v770 = vpop.f32.mrf.mxu0
        %v771 = vadd.f32 0.0, %v770
        %v772 = vpop.f32.mrf.mxu0
        %v773 = vpop.f32.mrf.mxu0
        %v774 = vadd.f32 0.0, %v773
        %v775 = vpop.f32.mrf.mxu0
        %776 = vmatprep.mubr.bf16.mxu0 0
        %777 = vmatmul.mubr.bf16.gmra.mxu0 %v681
        %v778 = vpop.f32.mrf.mxu0
        %v779 = vadd.f32 0.0, %v778
        %v780 = vpop.f32.mrf.mxu0
        %v781 = vpop.f32.mrf.mxu0
        %v782 = vadd.f32 0.0, %v781
        %v783 = vpop.f32.mrf.mxu0
        %784 = vmatprep.mubr.bf16.mxu0 0
        %785 = vmatmul.mubr.bf16.gmra.mxu0 %v682
        %v786 = vpop.f32.mrf.mxu0
        %v787 = vadd.f32 0.0, %v786
        %v788 = vpop.f32.mrf.mxu0
        %v789 = vpop.f32.mrf.mxu0
        %v790 = vadd.f32 0.0, %v789
        %v791 = vpop.f32.mrf.mxu0
        %792 = vmatprep.mubr.bf16.mxu0 0
        %793 = vmatmul.mubr.bf16.gmra.mxu0 %v683
        %v794 = vpop.f32.mrf.mxu0
        %v795 = vadd.f32 0.0, %v794
        %v796 = vpop.f32.mrf.mxu0
        %v797 = vpop.f32.mrf.mxu0
        %v798 = vadd.f32 0.0, %v797
        %v799 = vpop.f32.mrf.mxu0
        %800 = vdwg.mxu0
        %v801 = vadd.f32 %v648, %v771
        %v802 = vadd.f32 %v649, %v774
        %v803 = vadd.f32 %v650, %v779
        %v804 = vadd.f32 %v651, %v782
        %v805 = vadd.f32 %v652, %v787
        %v806 = vadd.f32 %v653, %v790
        %v807 = vadd.f32 %v654, %v795
        %v808 = vadd.f32 %v655, %v798
        %809 = vst [vmem:[#allocation2] sm:$0xff] %v801
        %810 = vst [vmem:[#allocation2 + $0x8] sm:$0xff] %v802
        %811 = vst [vmem:[#allocation2 + $0x10] sm:$0xff] %v803
        %812 = vst [vmem:[#allocation2 + $0x18] sm:$0xff] %v804
        %813 = vst [vmem:[#allocation2 + $0x20] sm:$0xff] %v805
        %814 = vst [vmem:[#allocation2 + $0x28] sm:$0xff] %v806
        %815 = vst [vmem:[#allocation2 + $0x30] sm:$0xff] %v807
        %816 = vst [vmem:[#allocation2 + $0x38] sm:$0xff] %v808
        %p817 = scmp.eq.s32.totalorder %s41, 1
        // Predicated region
        $region122: #{tpu_custom_call.1} parent=96 // pred_check
          %p818 = pneg %p817
        $region123: #{tpu_custom_call.1} parent=96 // pred_check_branch
          %820 = sbr.rel (%p818) target = $region125
        $region124: #{tpu_custom_call.1} parent=96 // pred_region
          %v821 = vld [vmem:[%s543] sm:$0xf]
          %v822 = vld [vmem:[%s543 + $0x4] sm:$0xf]
          %v823 = vld [vmem:[%s543 + $0x8] sm:$0xf]
          %v824 = vld [vmem:[%s543 + $0xc] sm:$0xf]
          %v825 = vld [vmem:[%s543 + $0x10] sm:$0xf]
          %v826 = vld [vmem:[%s543 + $0x14] sm:$0xf]
          %v827 = vld [vmem:[%s543 + $0x18] sm:$0xf]
          %v828 = vld [vmem:[%s543 + $0x1c] sm:$0xf]
          %v829 = vunpack.c.l.bf16 %v821
          %v830 = vunpack.c.l.bf16 %v822
          %v831 = vunpack.c.l.bf16 %v823
          %v832 = vunpack.c.l.bf16 %v824
          %v833 = vunpack.c.l.bf16 %v825
          %v834 = vunpack.c.l.bf16 %v826
          %v835 = vunpack.c.l.bf16 %v827
          %v836 = vunpack.c.l.bf16 %v828
          %v837 = vld [vmem:[#allocation2] sm:$0xff]
          %v838 = vld [vmem:[#allocation2 + $0x8] sm:$0xff]
          %v839 = vld [vmem:[#allocation2 + $0x10] sm:$0xff]
          %v840 = vld [vmem:[#allocation2 + $0x18] sm:$0xff]
          %v841 = vld [vmem:[#allocation2 + $0x20] sm:$0xff]
          %v842 = vld [vmem:[#allocation2 + $0x28] sm:$0xff]
          %v843 = vld [vmem:[#allocation2 + $0x30] sm:$0xff]
          %v844 = vld [vmem:[#allocation2 + $0x38] sm:$0xff]
          %v845 = vadd.f32 %v829, %v837
          %v846 = vadd.f32 %v830, %v838
          %v847 = vadd.f32 %v831, %v839
          %v848 = vadd.f32 %v832, %v840
          %v849 = vadd.f32 %v833, %v841
          %v850 = vadd.f32 %v834, %v842
          %v851 = vadd.f32 %v835, %v843
          %v852 = vadd.f32 %v836, %v844
          %v853 = vpack.c.bf16 %v846, %v845
          %v854 = vpack.c.bf16 %v848, %v847
          %v855 = vpack.c.bf16 %v850, %v849
          %v856 = vpack.c.bf16 %v852, %v851
          %v857 = vld [vmem:[#allocation9] sm:$0xf]
          %v858 = vld [vmem:[#allocation9 + $0x4] sm:$0xf]
          %v859 = vld [vmem:[#allocation9 + $0x8] sm:$0xf]
          %v860 = vld [vmem:[#allocation9 + $0xc] sm:$0xf]
          %v861 = vld [vmem:[#allocation9 + $0x10] sm:$0xf]
          %v862 = vld [vmem:[#allocation9 + $0x14] sm:$0xf]
          %v863 = vld [vmem:[#allocation9 + $0x18] sm:$0xf]
          %v864 = vld [vmem:[#allocation9 + $0x1c] sm:$0xf]
          %v865 = vld [vmem:[#allocation9 + $0x20] sm:$0xf]
          %v866 = vld [vmem:[#allocation9 + $0x24] sm:$0xf]
          %v867 = vld [vmem:[#allocation9 + $0x28] sm:$0xf]
          %v868 = vld [vmem:[#allocation9 + $0x2c] sm:$0xf]
          %v869 = vld [vmem:[#allocation9 + $0x30] sm:$0xf]
          %v870 = vld [vmem:[#allocation9 + $0x34] sm:$0xf]
          %v871 = vld [vmem:[#allocation9 + $0x38] sm:$0xf]
          %v872 = vld [vmem:[#allocation9 + $0x3c] sm:$0xf]
          %v873 = vld [vmem:[%s7] sm:$0x1]
          %v875 = vlaneseq
          %v876 = vshrl.u32 %v875, 7
          %v877 = vsub.s32 0, %v876
          %v878 = vrot.slane %v873, %v877
          %v896 = vunpack.c.l.b16 %v857
          %v897 = vunpack.c.l.b16 %v858
          %v898 = vunpack.c.l.b16 %v859
          %v899 = vunpack.c.l.b16 %v860
          %v900 = vunpack.c.l.b16 %v861
          %v901 = vunpack.c.l.b16 %v862
          %v902 = vunpack.c.l.b16 %v863
          %v903 = vunpack.c.l.b16 %v864
          %v904 = vunpack.c.l.b16 %v865
          %v905 = vunpack.c.l.b16 %v866
          %v906 = vunpack.c.l.b16 %v867
          %v907 = vunpack.c.l.b16 %v868
          %v908 = vunpack.c.l.b16 %v869
          %v909 = vunpack.c.l.b16 %v870
          %v910 = vunpack.c.l.b16 %v871
          %v911 = vunpack.c.l.b16 %v872
          %v912 = vpack.c.b16 %v897, %v896
          %v913 = vpack.c.b16 %v899, %v898
          %v914 = vpack.c.b16 %v901, %v900
          %v915 = vpack.c.b16 %v903, %v902
          %v916 = vpack.c.b16 %v905, %v904
          %v917 = vpack.c.b16 %v907, %v906
          %v918 = vpack.c.b16 %v909, %v908
          %v919 = vpack.c.b16 %v911, %v910
          %928 = vmatprep.subr.bf16.mxu0 0
          %929 = vmatpush1.bf16.msra.mxu0 %v919
          %930 = vmatprep.subr.bf16.mxu0 0
          %931 = vmatpush1.bf16.msra.mxu0 %v918
          %932 = vmatprep.subr.bf16.mxu0 0
          %933 = vmatpush1.bf16.msra.mxu0 %v917
          %934 = vmatprep.subr.bf16.mxu0 0
          %935 = vmatpush1.bf16.msra.mxu0 %v916
          %936 = vmatprep.subr.bf16.mxu0 0
          %937 = vmatpush1.bf16.msra.mxu0 %v915
          %938 = vmatprep.subr.bf16.mxu0 0
          %939 = vmatpush1.bf16.msra.mxu0 %v914
          %940 = vmatprep.subr.bf16.mxu0 0
          %941 = vmatpush1.bf16.msra.mxu0 %v913
          %942 = vmatprep.subr.bf16.mxu0 0
          %943 = vmatpush1.bf16.msra.mxu0 %v912
          %944 = vmatprep.subr.bf16.mxu0 0
          %945 = vmatpush2.bf16.msra.mxu0 0
          %946 = vmatprep.subr.bf16.mxu0 0
          %947 = vmatpush2.bf16.msra.mxu0 0
          %948 = vmatprep.subr.bf16.mxu0 0
          %949 = vmatpush2.bf16.msra.mxu0 0
          %950 = vmatprep.subr.bf16.mxu0 0
          %951 = vmatpush2.bf16.msra.mxu0 0
          %952 = vmatprep.subr.bf16.mxu0 0
          %953 = vmatpush2.bf16.msra.mxu0 0
          %954 = vmatprep.subr.bf16.mxu0 0
          %955 = vmatpush2.bf16.msra.mxu0 0
          %956 = vmatprep.subr.bf16.mxu0 0
          %957 = vmatpush2.bf16.msra.mxu0 0
          %958 = vmatprep.subr.bf16.mxu0 0
          %959 = vmatpush2.bf16.msra.mxu0 0
          %960 = vmatprep.mubr.bf16.mxu0 0
          %961 = vmatmul.mubr.bf16.gmra.mxu0 %v853
          %v962 = vpop.f32.mrf.mxu0
          %v963 = vadd.f32 %v878, %v962
          %v964 = vpop.f32.mrf.mxu0
          %v965 = vpop.f32.mrf.mxu0
          %v966 = vadd.f32 %v878, %v965
          %v967 = vpop.f32.mrf.mxu0
          %968 = vmatprep.mubr.bf16.mxu0 0
          %969 = vmatmul.mubr.bf16.gmra.mxu0 %v854
          %v970 = vpop.f32.mrf.mxu0
          %v971 = vadd.f32 %v878, %v970
          %v972 = vpop.f32.mrf.mxu0
          %v973 = vpop.f32.mrf.mxu0
          %v974 = vadd.f32 %v878, %v973
          %v975 = vpop.f32.mrf.mxu0
          %976 = vmatprep.mubr.bf16.mxu0 0
          %977 = vmatmul.mubr.bf16.gmra.mxu0 %v855
          %v978 = vpop.f32.mrf.mxu0
          %v979 = vadd.f32 %v878, %v978
          %v980 = vpop.f32.mrf.mxu0
          %v981 = vpop.f32.mrf.mxu0
          %v982 = vadd.f32 %v878, %v981
          %v983 = vpop.f32.mrf.mxu0
          %984 = vmatprep.mubr.bf16.mxu0 0
          %985 = vmatmul.mubr.bf16.gmra.mxu0 %v856
          %v986 = vpop.f32.mrf.mxu0
          %v987 = vadd.f32 %v878, %v986
          %v988 = vpop.f32.mrf.mxu0
          %v989 = vpop.f32.mrf.mxu0
          %v990 = vadd.f32 %v878, %v989
          %v991 = vpop.f32.mrf.mxu0
          %992 = vdwg.mxu0
          %v993 = vmax.f32 %v963, 0.0
          %v994 = vmax.f32 %v966, 0.0
          %v995 = vmax.f32 %v971, 0.0
          %v996 = vmax.f32 %v974, 0.0
          %v997 = vmax.f32 %v979, 0.0
          %v998 = vmax.f32 %v982, 0.0
          %v999 = vmax.f32 %v987, 0.0
          %v1000 = vmax.f32 %v990, 0.0
          %v1001 = vpack.c.bf16 %v994, %v993
          %v1002 = vpack.c.bf16 %v996, %v995
          %v1003 = vpack.c.bf16 %v998, %v997
          %v1004 = vpack.c.bf16 %v1000, %v999
          %v1005 = vld [vmem:[#allocation10] sm:$0xf]
          %v1006 = vld [vmem:[#allocation10 + $0x4] sm:$0xf]
          %v1007 = vld [vmem:[#allocation10 + $0x8] sm:$0xf]
          %v1008 = vld [vmem:[#allocation10 + $0xc] sm:$0xf]
          %v1009 = vld [vmem:[#allocation10 + $0x10] sm:$0xf]
          %v1010 = vld [vmem:[#allocation10 + $0x14] sm:$0xf]
          %v1011 = vld [vmem:[#allocation10 + $0x18] sm:$0xf]
          %v1012 = vld [vmem:[#allocation10 + $0x1c] sm:$0xf]
          %v1013 = vld [vmem:[#allocation10 + $0x20] sm:$0xf]
          %v1014 = vld [vmem:[#allocation10 + $0x24] sm:$0xf]
          %v1015 = vld [vmem:[#allocation10 + $0x28] sm:$0xf]
          %v1016 = vld [vmem:[#allocation10 + $0x2c] sm:$0xf]
          %v1017 = vld [vmem:[#allocation10 + $0x30] sm:$0xf]
          %v1018 = vld [vmem:[#allocation10 + $0x34] sm:$0xf]
          %v1019 = vld [vmem:[#allocation10 + $0x38] sm:$0xf]
          %v1020 = vld [vmem:[#allocation10 + $0x3c] sm:$0xf]
          %v1021 = vld [vmem:[%s9] sm:$0x1]
          %v1023 = vlaneseq
          %v1024 = vshrl.u32 %v1023, 7
          %v1025 = vsub.s32 0, %v1024
          %v1026 = vrot.slane %v1021, %v1025
          %v1044 = vunpack.c.l.b16 %v1005
          %v1045 = vunpack.c.l.b16 %v1006
          %v1046 = vunpack.c.l.b16 %v1007
          %v1047 = vunpack.c.l.b16 %v1008
          %v1048 = vunpack.c.l.b16 %v1009
          %v1049 = vunpack.c.l.b16 %v1010
          %v1050 = vunpack.c.l.b16 %v1011
          %v1051 = vunpack.c.l.b16 %v1012
          %v1052 = vunpack.c.l.b16 %v1013
          %v1053 = vunpack.c.l.b16 %v1014
          %v1054 = vunpack.c.l.b16 %v1015
          %v1055 = vunpack.c.l.b16 %v1016
          %v1056 = vunpack.c.l.b16 %v1017
          %v1057 = vunpack.c.l.b16 %v1018
          %v1058 = vunpack.c.l.b16 %v1019
          %v1059 = vunpack.c.l.b16 %v1020
          %v1060 = vpack.c.b16 %v1045, %v1044
          %v1061 = vpack.c.b16 %v1047, %v1046
          %v1062 = vpack.c.b16 %v1049, %v1048
          %v1063 = vpack.c.b16 %v1051, %v1050
          %v1064 = vpack.c.b16 %v1053, %v1052
          %v1065 = vpack.c.b16 %v1055, %v1054
          %v1066 = vpack.c.b16 %v1057, %v1056
          %v1067 = vpack.c.b16 %v1059, %v1058
          %1076 = vmatprep.subr.bf16.mxu0 0
          %1077 = vmatpush1.bf16.msra.mxu0 %v1067
          %1078 = vmatprep.subr.bf16.mxu0 0
          %1079 = vmatpush1.bf16.msra.mxu0 %v1066
          %1080 = vmatprep.subr.bf16.mxu0 0
          %1081 = vmatpush1.bf16.msra.mxu0 %v1065
          %1082 = vmatprep.subr.bf16.mxu0 0
          %1083 = vmatpush1.bf16.msra.mxu0 %v1064
          %1084 = vmatprep.subr.bf16.mxu0 0
          %1085 = vmatpush1.bf16.msra.mxu0 %v1063
          %1086 = vmatprep.subr.bf16.mxu0 0
          %1087 = vmatpush1.bf16.msra.mxu0 %v1062
          %1088 = vmatprep.subr.bf16.mxu0 0
          %1089 = vmatpush1.bf16.msra.mxu0 %v1061
          %1090 = vmatprep.subr.bf16.mxu0 0
          %1091 = vmatpush1.bf16.msra.mxu0 %v1060
          %1092 = vmatprep.subr.bf16.mxu0 0
          %1093 = vmatpush2.bf16.msra.mxu0 0
          %1094 = vmatprep.subr.bf16.mxu0 0
          %1095 = vmatpush2.bf16.msra.mxu0 0
          %1096 = vmatprep.subr.bf16.mxu0 0
          %1097 = vmatpush2.bf16.msra.mxu0 0
          %1098 = vmatprep.subr.bf16.mxu0 0
          %1099 = vmatpush2.bf16.msra.mxu0 0
          %1100 = vmatprep.subr.bf16.mxu0 0
          %1101 = vmatpush2.bf16.msra.mxu0 0
          %1102 = vmatprep.subr.bf16.mxu0 0
          %1103 = vmatpush2.bf16.msra.mxu0 0
          %1104 = vmatprep.subr.bf16.mxu0 0
          %1105 = vmatpush2.bf16.msra.mxu0 0
          %1106 = vmatprep.subr.bf16.mxu0 0
          %1107 = vmatpush2.bf16.msra.mxu0 0
          %1108 = vmatprep.mubr.bf16.mxu0 0
          %1109 = vmatmul.mubr.bf16.gmra.mxu0 %v1001
          %v1110 = vpop.f32.mrf.mxu0
          %v1111 = vadd.f32 %v1026, %v1110
          %v1112 = vpop.f32.mrf.mxu0
          %v1113 = vpop.f32.mrf.mxu0
          %v1114 = vadd.f32 %v1026, %v1113
          %v1115 = vpop.f32.mrf.mxu0
          %1116 = vmatprep.mubr.bf16.mxu0 0
          %1117 = vmatmul.mubr.bf16.gmra.mxu0 %v1002
          %v1118 = vpop.f32.mrf.mxu0
          %v1119 = vadd.f32 %v1026, %v1118
          %v1120 = vpop.f32.mrf.mxu0
          %v1121 = vpop.f32.mrf.mxu0
          %v1122 = vadd.f32 %v1026, %v1121
          %v1123 = vpop.f32.mrf.mxu0
          %1124 = vmatprep.mubr.bf16.mxu0 0
          %1125 = vmatmul.mubr.bf16.gmra.mxu0 %v1003
          %v1126 = vpop.f32.mrf.mxu0
          %v1127 = vadd.f32 %v1026, %v1126
          %v1128 = vpop.f32.mrf.mxu0
          %v1129 = vpop.f32.mrf.mxu0
          %v1130 = vadd.f32 %v1026, %v1129
          %v1131 = vpop.f32.mrf.mxu0
          %1132 = vmatprep.mubr.bf16.mxu0 0
          %1133 = vmatmul.mubr.bf16.gmra.mxu0 %v1004
          %v1134 = vpop.f32.mrf.mxu0
          %v1135 = vadd.f32 %v1026, %v1134
          %v1136 = vpop.f32.mrf.mxu0
          %v1137 = vpop.f32.mrf.mxu0
          %v1138 = vadd.f32 %v1026, %v1137
          %v1139 = vpop.f32.mrf.mxu0
          %1140 = vdwg.mxu0
          %v1141 = vld [vmem:[%s616] sm:$0xff]
          %v1142 = vld [vmem:[%s616 + $0x8] sm:$0xff]
          %v1143 = vld [vmem:[%s616 + $0x10] sm:$0xff]
          %v1144 = vld [vmem:[%s616 + $0x18] sm:$0xff]
          %v1145 = vld [vmem:[%s616 + $0x20] sm:$0xff]
          %v1146 = vld [vmem:[%s616 + $0x28] sm:$0xff]
          %v1147 = vld [vmem:[%s616 + $0x30] sm:$0xff]
          %v1148 = vld [vmem:[%s616 + $0x38] sm:$0xff]
          %1150 = vset.pattern.permute.xlu0 0
          %1151 = vperm.xlu0 %1150, %v1141
          %v1152 = vpop.permute.xlu0 %1151
          %1155 = vset.pattern.permute.xlu0 0
          %1156 = vperm.xlu0 %1155, %v1142
          %v1157 = vpop.permute.xlu0 %1156
          %1160 = vset.pattern.permute.xlu0 0
          %1161 = vperm.xlu0 %1160, %v1143
          %v1162 = vpop.permute.xlu0 %1161
          %1165 = vset.pattern.permute.xlu0 0
          %1166 = vperm.xlu0 %1165, %v1144
          %v1167 = vpop.permute.xlu0 %1166
          %1170 = vset.pattern.permute.xlu0 0
          %1171 = vperm.xlu0 %1170, %v1145
          %v1172 = vpop.permute.xlu0 %1171
          %1175 = vset.pattern.permute.xlu0 0
          %1176 = vperm.xlu0 %1175, %v1146
          %v1177 = vpop.permute.xlu0 %1176
          %1180 = vset.pattern.permute.xlu0 0
          %1181 = vperm.xlu0 %1180, %v1147
          %v1182 = vpop.permute.xlu0 %1181
          %1185 = vset.pattern.permute.xlu0 0
          %1186 = vperm.xlu0 %1185, %v1148
          %v1187 = vpop.permute.xlu0 %1186
          %v1189 = vmul.f32 %v1111, %v1152
          %v1190 = vmul.f32 %v1114, %v1157
          %v1191 = vmul.f32 %v1119, %v1162
          %v1192 = vmul.f32 %v1122, %v1167
          %v1193 = vmul.f32 %v1127, %v1172
          %v1194 = vmul.f32 %v1130, %v1177
          %v1195 = vmul.f32 %v1135, %v1182
          %v1196 = vmul.f32 %v1138, %v1187
          %v1197 = vadd.f32 %v1189, %v1190
          %v1198 = vadd.f32 %v1197, %v1191
          %v1199 = vadd.f32 %v1198, %v1192
          %v1200 = vadd.f32 %v1199, %v1193
          %v1201 = vadd.f32 %v1200, %v1194
          %v1202 = vadd.f32 %v1201, %v1195
          %v1203 = vadd.f32 %v1202, %v1196
          %v1204 = vrot.slane %v1203, 4
          %v1205 = vadd.f32 %v1203, %v1204
          %v1206 = vrot.slane %v1205, 2
          %v1207 = vadd.f32 %v1205, %v1206
          %v1208 = vrot.slane %v1207, 1
          %v1209 = vadd.f32 %v1207, %v1208
          %v1210 = vmul.f32 %v1189, %v1111
          %v1211 = vmul.f32 %v1190, %v1114
          %v1212 = vmul.f32 %v1191, %v1119
          %v1213 = vmul.f32 %v1192, %v1122
          %v1214 = vmul.f32 %v1193, %v1127
          %v1215 = vmul.f32 %v1194, %v1130
          %v1216 = vmul.f32 %v1195, %v1135
          %v1217 = vmul.f32 %v1196, %v1138
          %v1218 = vadd.f32 %v1210, %v1211
          %v1219 = vadd.f32 %v1218, %v1212
          %v1220 = vadd.f32 %v1219, %v1213
          %v1221 = vadd.f32 %v1220, %v1214
          %v1222 = vadd.f32 %v1221, %v1215
          %v1223 = vadd.f32 %v1222, %v1216
          %v1224 = vadd.f32 %v1223, %v1217
          %v1225 = vrot.slane %v1224, 4
          %v1226 = vadd.f32 %v1224, %v1225
          %v1227 = vrot.slane %v1226, 2
          %v1228 = vadd.f32 %v1226, %v1227
          %v1229 = vrot.slane %v1228, 1
          %v1230 = vadd.f32 %v1228, %v1229
          %vm1231 = vcmask 1040384
          %v1232 = vsel %vm1231, %v1209, %v1230
          %1233 = vst [vmem:[%s608] sm:$0x3] %v1232
          %v1234 = vpack.c.bf16 %v1114, %v1111
          %v1235 = vpack.c.bf16 %v1122, %v1119
          %v1236 = vpack.c.bf16 %v1130, %v1127
          %v1237 = vpack.c.bf16 %v1138, %v1135
          %v1242 = vunpack.c.l.b16 %v1234
          %v1243 = vunpack.c.h.b16 %v1234
          %v1244 = vunpack.c.l.b16 %v1235
          %v1245 = vunpack.c.h.b16 %v1235
          %v1246 = vunpack.c.l.b16 %v1236
          %v1247 = vunpack.c.h.b16 %v1236
          %v1248 = vunpack.c.l.b16 %v1237
          %v1249 = vunpack.c.h.b16 %v1237
          %v1250 = vpack.c.b16 %v1242, %v1242
          %v1251 = vpack.c.b16 %v1243, %v1243
          %v1252 = vpack.c.b16 %v1244, %v1244
          %v1253 = vpack.c.b16 %v1245, %v1245
          %v1254 = vpack.c.b16 %v1246, %v1246
          %v1255 = vpack.c.b16 %v1247, %v1247
          %v1256 = vpack.c.b16 %v1248, %v1248
          %v1257 = vpack.c.b16 %v1249, %v1249
          %1266 = vst [vmem:[%s601] sm:$0xf] %v1250
          %1267 = vst [vmem:[%s601 + $0x4] sm:$0xf] %v1251
          %1268 = vst [vmem:[%s601 + $0x8] sm:$0xf] %v1252
          %1269 = vst [vmem:[%s601 + $0xc] sm:$0xf] %v1253
          %1270 = vst [vmem:[%s601 + $0x10] sm:$0xf] %v1254
          %1271 = vst [vmem:[%s601 + $0x14] sm:$0xf] %v1255
          %1272 = vst [vmem:[%s601 + $0x18] sm:$0xf] %v1256
          %1273 = vst [vmem:[%s601 + $0x1c] sm:$0xf] %v1257
        $region125: #{tpu_custom_call.1} parent=96 // pred_fallthru
          _
        %s1274 = sand.u32 %s288, 1
        %s1275 = scalar_lea.sflag [#allocation6], %s1274
        %s1276 = sand.u32 %s288, 1
        %s1277 = smul.addr %s1276, 32
        %s1278 = scalar_lea.vmem [#allocation12], %s1277
        %s1279 = sand.u32 %s314, 1
        %s1280 = scalar_lea.sflag [#allocation14], %s1279
        %s1281 = sand.u32 %s314, 1
        %s1282 = smul.addr %s1281, 2
        %s1283 = scalar_lea.vmem [#allocation13], %s1282
        // Predicated region
        $region126: #{tpu_custom_call.1} parent=96 // pred_check
          %p1284 = pneg %p298
        $region127: #{tpu_custom_call.1} parent=96 // pred_check_branch
          %1286 = sbr.rel (%p1284) target = $region129
        $region128: #{tpu_custom_call.1} parent=96 // pred_region
          %s1287 = smul.u32 8, %s40
          %s1289 = ssub.s32 512, 512
          %1290 = vsyncadd %s1275, %s1289
          %s1291 = smul.addr %s1287, 64
          %s1292 = scalar_lea.hbm %s10, %s1291
          %s1293 = sshll.u32 %s1278, 4
          %s1294 = int_to_ptr.vmem [resolvable:$true] %s1293
          %1299 = dma.vmem_to_hbm [thread:$0]  %s1294, 512, %s1292, %s1275, 64, 64, 4
        $region129: #{tpu_custom_call.1} parent=96 // pred_fallthru
          _
        // Predicated region
        $region130: #{tpu_custom_call.1} parent=96 // pred_check
          %p1300 = pneg %p324
        $region131: #{tpu_custom_call.1} parent=96 // pred_check_branch
          %1302 = sbr.rel (%p1300) target = $region133
        $region132: #{tpu_custom_call.1} parent=96 // pred_region
          %s1304 = ssub.s32 32, 32
          %1305 = vsyncadd %s1280, %s1304
          %s1306 = smul.addr %s40, 32
          %s1307 = scalar_lea.hbm %s11, %s1306
          %s1309 = sshll.u32 %s1283, 4
          %s1310 = int_to_ptr.vmem [resolvable:$true] %s1309
          %1312 = dma.vmem_to_hbm [thread:$0]  %s1310, 32, %s1307, %s1280
        $region133: #{tpu_custom_call.1} parent=96 // pred_fallthru
          _
      $region97: #{tpu_custom_call.1} parent=5 // pred_fallthru
        _
      %p1313 = scmp.le.s32.totalorder 2, %s31
      // Predicated region
      $region134: #{tpu_custom_call.1} parent=5 // pred_check
        %p1314 = pneg %p1313
      $region135: #{tpu_custom_call.1} parent=5 // pred_check_branch
        %1316 = sbr.rel (%p1314) target = $region137
      $region136: #{tpu_custom_call.1} parent=5 // pred_region
        %s1317 = ssub.s32 %s31, 2
        // Predicated region
        $region138: #{tpu_custom_call.1} parent=136 // pred_check
          %p1318 = pneg %p304
        $region139: #{tpu_custom_call.1} parent=136 // pred_check_branch
          %1320 = sbr.rel (%p1318) target = $region141
        $region140: #{tpu_custom_call.1} parent=136 // pred_region
          %s1321 = sand.u32 %s289, 1
          %s1322 = scalar_lea.sflag [#allocation6], %s1321
          %s1323 = sand.u32 %s289, 1
          %s1324 = smul.addr %s1323, 32
          %s1325 = scalar_lea.vmem [#allocation12], %s1324
          %1326 = dma.done %s1322, 512
        $region141: #{tpu_custom_call.1} parent=136 // pred_fallthru
          _
        // Predicated region
        $region142: #{tpu_custom_call.1} parent=136 // pred_check
          %p1327 = pneg %p330
        $region143: #{tpu_custom_call.1} parent=136 // pred_check_branch
          %1329 = sbr.rel (%p1327) target = $region145
        $region144: #{tpu_custom_call.1} parent=136 // pred_region
          %s1330 = sand.u32 %s315, 1
          %s1331 = scalar_lea.sflag [#allocation14], %s1330
          %s1332 = sand.u32 %s315, 1
          %s1333 = smul.addr %s1332, 2
          %s1334 = scalar_lea.vmem [#allocation13], %s1333
          %1335 = dma.done %s1331, 32
        $region145: #{tpu_custom_call.1} parent=136 // pred_fallthru
          _
      $region137: #{tpu_custom_call.1} parent=5 // pred_fallthru
        _
    $region6: #{tpu_custom_call.1} parent=1 // loop_footer
      %s35 = sadd.s32 1, %s31
    $region7: #{tpu_custom_call.1} parent=1 // loop_footer_branch
      %30 = sbr.rel target = $region3
    $region8: #{tpu_custom_call.1} parent=1 // loop_exit
      _
    %1336 = vsyncpa [#allocation5], 1
    %s1337 = scalar_lea.sflag [#allocation5], 1
    %1338 = vsyncpa %s1337, 1
    %1339 = vsyncpa [#allocation8], 1
    %s1340 = scalar_lea.sflag [#allocation8], 1
    %1341 = vsyncpa %s1340, 1
    %1342 = vsyncpa [#allocation11], 1
    %1343 = vsyncpa [#allocation6], 1
    %s1344 = scalar_lea.sflag [#allocation6], 1
    %1345 = vsyncpa %s1344, 1
    %1346 = vsyncpa [#allocation14], 1
    %s1347 = scalar_lea.sflag [#allocation14], 1
    %1348 = vsyncpa %s1347, 1

</llo_original>
